<compile_context>
chip_gen: v5e
topology: v5e:2x2
jax: 0.10.0
libtpu: 0.0.40
codegen_flags: <defaults>
</compile_context>

<pallas_src>
import math
import functools

import jax
import jax.numpy as jnp
from jax.experimental import pallas as pl
from jax.experimental.pallas import tpu as pltpu

# ----------------------------- configuration -----------------------------
HIDDEN = 32
NUM_LAYERS = 2
K_TOP = 3
IN_FEATS = {"drug": 24, "disease": 20}
# (src_type, relation_name, dst_type) -- order defines the weight stacking.
ETYPES = [
    ("disease", "disease-disease", "disease"),
    ("drug", "drug-disease", "disease"),
    ("drug", "drug-drug", "drug"),
]


# ---------------- packed-weight layout (static, shared by packer & kernel) ----------------
def _build_w32_offsets():
    off, cur = {}, 0

    def add(name, rows):
        nonlocal cur
        off[name] = (cur, cur + rows)
        cur = ((cur + rows + 7) // 8) * 8          # keep every segment 8-row aligned

    add("lin_drug", IN_FEATS["drug"])
    add("lin_dis", IN_FEATS["disease"])
    for l in range(NUM_LAYERS):
        add(f"dis_stack_{l}", 2 * HIDDEN)           # [w_dd ; w_drdis] per layer
    for l in range(NUM_LAYERS):
        add(f"drdr_{l}", HIDDEN)                    # w_drdr per layer
    add("res_drug", HIDDEN * (NUM_LAYERS + 1))
    add("res_dis", HIDDEN * (NUM_LAYERS + 1))
    add("agg_drug_dis", 2 * HIDDEN)                 # block_diag(wdrug, wdis)
    add("mil_w1", HIDDEN)
    return off, cur


W32_OFFSETS, W32_ROWS = _build_w32_offsets()        # (528, 32) for the default config
W64_ROWS = 4 * HIDDEN                               # [block_diag(wdd, wdisdr) ; W_head]
BIAS_MIL_ROW = 2 + 2 * NUM_LAYERS
BIAS_PRELU_ROW = 3 + 2 * NUM_LAYERS
BIAS_ROWS = BIAS_PRELU_ROW + 1                      # 8 for NUM_LAYERS=2


# ----------------------------- fused Pallas kernel -----------------------------
def _fused_forward_kernel(
    feat_drug_ref, feat_dis_ref,
    at_dd_ref, at_drdis_ref, at_drdr_ref,           # PRE-normalized transposed adjacencies
    ids_ref,                                         # (2*bi, 2) int32 [drug idx | disease idx]
    w32_ref, w64_ref, bias_ref,                      # packed parameter blobs
    out_ref,                                         # (1, B + B*I) lane-dense output row
    *, num_layers, bags, insts, k,
):
    f32 = jnp.float32
    H = HIDDEN
    bi = bags * insts
    n_drug = feat_drug_ref.shape[0]
    n_dis = feat_dis_ref.shape[0]

    def mm(a, b):
        return jnp.dot(a, b, preferred_element_type=f32)

    def w32(name):
        s, e = W32_OFFSETS[name]
        return w32_ref[pl.ds(s, e - s), :]

    bvec = bias_ref[...]                                                 # (BIAS_ROWS, 32)

    # ---------------- HeteroLinear ----------------
    h_drug = mm(feat_drug_ref[...], w32("lin_drug")) + bvec[0:1, :]
    h_dis = mm(feat_dis_ref[...], w32("lin_dis")) + bvec[1:2, :]

    at_dd = at_dd_ref[...]                                               # (n_dis, n_dis)
    at_drdis = at_drdis_ref[...]                                         # (n_dis, n_drug)
    at_drdr = at_drdr_ref[...]                                           # (n_drug, n_drug)

    # ------- Node_Embedding layers: fused per-relation GraphConv + sum + PReLU -------
    drug_layers = [h_drug]
    dis_layers = [h_dis]
    for l in range(num_layers):
        # disease dst: two relations fused into one stacked-K matmul (K = 2H)
        m_dis = jnp.concatenate([mm(at_dd, h_dis), mm(at_drdis, h_drug)], axis=1)
        new_dis = mm(m_dis, w32(f"dis_stack_{l}")) + bvec[2 + l:3 + l, :]
        # drug dst: single relation
        new_drug = (mm(mm(at_drdr, h_drug), w32(f"drdr_{l}"))
                    + bvec[2 + num_layers + l:3 + num_layers + l, :])
        alpha = bvec[BIAS_PRELU_ROW:BIAS_PRELU_ROW + 1, l:l + 1]         # (1, 1)
        h_dis = jnp.where(new_dis > 0, new_dis, alpha * new_dis)         # PReLU
        h_drug = jnp.where(new_drug > 0, new_drug, alpha * new_drug)
        drug_layers.append(h_drug)
        dis_layers.append(h_dis)

    # ---------------- residual concat + projection ----------------
    h_res_drug = mm(jnp.concatenate(drug_layers, axis=1), w32("res_drug"))
    h_res_dis = mm(jnp.concatenate(dis_layers, axis=1), w32("res_dis"))

    # -------- meta-path gather: two stacked one-hot selection matmuls --------
    idv = ids_ref[...]                                                   # (2*bi, 2)
    lane_dr = jax.lax.broadcasted_iota(jnp.int32, (2 * bi, n_drug), 1)
    g_dr = mm(jnp.where(idv[:, 0:1] == lane_dr, 1.0, 0.0), h_res_drug)   # (2*bi, H)
    lane_di = jax.lax.broadcasted_iota(jnp.int32, (2 * bi, n_dis), 1)
    g_di = mm(jnp.where(idv[:, 1:2] == lane_di, 1.0, 0.0), h_res_dis)    # (2*bi, H)
    f0 = g_dr[:bi, :]
    f1 = g_dr[bi:, :]
    f2 = g_di[:bi, :]
    f3 = g_di[bi:, :]

    # ---------------- MetaPathAggregator (BiTrans), block-diag fused ----------------
    u = jnp.concatenate([(f0 + f1) * 0.5, (f3 + f2) * 0.5], axis=1)      # (bi, 2H)
    v = mm(u, w64_ref[pl.ds(0, 2 * H), :])                               # (bi, 2H)
    dis_feat = ((v[:, :H] + f2) * 0.5 + f3) * 0.5
    drug_feat = ((v[:, H:] + f1) * 0.5 + f0) * 0.5
    ins_emb = mm(jnp.concatenate([drug_feat, dis_feat], axis=1),
                 w32("agg_drug_dis"))                                    # (bi, H)

    # ---------------- MIL attention + bag / instance heads ----------------
    h1 = jnp.tanh(mm(ins_emb, w32("mil_w1")) + bvec[BIAS_MIL_ROW:BIAS_MIL_ROW + 1, :])
    # one fused head matmul: col0 = MIL score, col1 = bag predictor, cols 2:2+H/2 = InstanceNet proj
    head = mm(jnp.concatenate([h1, ins_emb], axis=1),
              w64_ref[pl.ds(2 * H, 2 * H), :])                           # (bi, 2H)
    s = head[:, 0:1]                                                     # (bi, 1)
    q = head[:, 1:2]                                                     # (bi, 1)
    half = H // 2
    proj = head[:, 2:2 + half]                                           # (bi, H/2)
    p = jnp.sum(proj * ins_emb[:, half:], axis=1, keepdims=True)         # (bi, 1)

    # per-bag softmax via segment masks (rows = instances, cols = bags)
    row = jax.lax.broadcasted_iota(jnp.int32, (bi, bags), 0)
    col = jax.lax.broadcasted_iota(jnp.int32, (bi, bags), 1)
    seg = jnp.logical_and(row >= col * insts, row < (col + 1) * insts)   # (bi, B)
    neg = jnp.float32(-1e30)

    m = jnp.max(jnp.where(seg, s, neg), axis=0, keepdims=True)           # (1, B)
    m_j = jnp.sum(jnp.where(seg, m, 0.0), axis=1, keepdims=True)         # (bi, 1)
    e = jnp.exp(s - m_j)
    d = jnp.sum(jnp.where(seg, e, 0.0), axis=0, keepdims=True)           # (1, B)
    d_j = jnp.sum(jnp.where(seg, d, 0.0), axis=1, keepdims=True)         # (bi, 1)
    attn = e * pl.reciprocal(d_j, approx=True)                           # (bi, 1)

    # bag prediction: bag_emb @ wbag == sum_j attn_j * (ins_j @ wbag)  (bias-free linear)
    pred_bag = jnp.sum(jnp.where(seg, attn * q, 0.0), axis=0, keepdims=True)   # (1, B)

    # InstanceNet: mean of top-k (attn * instance score) per bag
    ap = attn * p
    vals = jnp.where(seg, ap, neg)                                       # (bi, B)
    acc = jnp.zeros((1, bags), f32)
    for _ in range(k):
        cur = jnp.max(vals, axis=0, keepdims=True)                       # (1, B)
        idx = jnp.min(jnp.where(vals == cur, row, bi), axis=0, keepdims=True)
        acc = acc + cur
        vals = jnp.where(row == idx, neg, vals)                          # drop one hit per bag
    pred = (acc * (1.0 / k) + pred_bag) * 0.5                            # (1, B)

    # attention as a lane-dense row via masked identity reduce ((bi,1) -> (1,bi))
    rr = jax.lax.broadcasted_iota(jnp.int32, (bi, bi), 0)
    cc = jax.lax.broadcasted_iota(jnp.int32, (bi, bi), 1)
    attn_row = jnp.sum(jnp.where(rr == cc, attn, 0.0), axis=0, keepdims=True)  # (1, bi)

    out_ref[...] = jnp.concatenate([pred, attn_row], axis=1)             # (1, B + bi)


# ----------------------------- parameter init (unpacked, reference layout) -----------------------------
def xavier_uniform(key, fan_in, fan_out):
    bound = math.sqrt(6.0 / (fan_in + fan_out))
    return jax.random.uniform(key, (fan_in, fan_out), jnp.float32, -bound, bound)


def xavier_normal(key, fan_in, fan_out):
    std = math.sqrt(2.0 / (fan_in + fan_out))
    return std * jax.random.normal(key, (fan_in, fan_out), jnp.float32)


def init_params(key):
    keys = iter(jax.random.split(key, 64))
    params = {}
    params["lin"] = {}
    for t, f in IN_FEATS.items():
        bound = 1.0 / math.sqrt(f)
        params["lin"][t] = {
            "w": xavier_uniform(next(keys), f, HIDDEN),
            "b": jax.random.uniform(next(keys), (1, HIDDEN), jnp.float32, -bound, bound),
        }
    emb_w, emb_b = [], []
    for _ in range(NUM_LAYERS):
        for _rel in ETYPES:
            emb_w.append(xavier_normal(next(keys), HIDDEN, HIDDEN))
            emb_b.append(jnp.zeros((1, HIDDEN), jnp.float32))
    params["emb_w"] = jnp.stack(emb_w)                                   # (L*3, H, H)
    params["emb_b"] = jnp.stack(emb_b)                                   # (L*3, 1, H)
    params["prelu"] = jnp.full((NUM_LAYERS, 1, 1), 0.25, jnp.float32)
    params["res"] = {
        t: xavier_uniform(next(keys), HIDDEN * (NUM_LAYERS + 1), HIDDEN)
        for t in ["drug", "disease"]
    }
    params["agg"] = {
        "wdd": xavier_uniform(next(keys), HIDDEN, HIDDEN),
        "wdisdr": xavier_uniform(next(keys), HIDDEN, HIDDEN),
        "wdrug": xavier_uniform(next(keys), HIDDEN, HIDDEN // 2),
        "wdis": xavier_uniform(next(keys), HIDDEN, HIDDEN // 2),
    }
    bound = 1.0 / math.sqrt(HIDDEN)
    params["mil"] = {
        "w1": xavier_uniform(next(keys), HIDDEN, HIDDEN),
        "b1": jax.random.uniform(next(keys), (1, HIDDEN), jnp.float32, -bound, bound),
        "w2": xavier_uniform(next(keys), HIDDEN, 1),
    }
    params["wbag"] = xavier_uniform(next(keys), HIDDEN, 1)
    params["wins"] = xavier_uniform(next(keys), HIDDEN // 2, HIDDEN // 2)
    return params


# ----------------------------- one-time packing / preprocessing -----------------------------
def pack_params(params):
    """Pack all weights into 3 blobs (run once, outside the jitted forward)."""
    H, L = HIDDEN, NUM_LAYERS

    w32 = jnp.zeros((W32_ROWS, H), jnp.float32)

    def put(blob, name, mat):
        s, e = W32_OFFSETS[name]
        assert mat.shape[0] == e - s
        return blob.at[s:e, :].set(mat)

    w32 = put(w32, "lin_drug", params["lin"]["drug"]["w"])
    w32 = put(w32, "lin_dis", params["lin"]["disease"]["w"])
    for l in range(L):
        w_dd, w_drdis, w_drdr = (params["emb_w"][3 * l + i] for i in range(3))
        w32 = put(w32, f"dis_stack_{l}", jnp.concatenate([w_dd, w_drdis], axis=0))
        w32 = put(w32, f"drdr_{l}", w_drdr)
    w32 = put(w32, "res_drug", params["res"]["drug"])
    w32 = put(w32, "res_dis", params["res"]["disease"])
    bd = jnp.zeros((2 * H, H), jnp.float32)                       # block_diag(wdrug, wdis)
    bd = bd.at[:H, :H // 2].set(params["agg"]["wdrug"])
    bd = bd.at[H:, H // 2:].set(params["agg"]["wdis"])
    w32 = put(w32, "agg_drug_dis", bd)
    w32 = put(w32, "mil_w1", params["mil"]["w1"])

    w64 = jnp.zeros((W64_ROWS, 2 * H), jnp.float32)
    # rows 0:2H = block_diag(wdd, wdisdr) for the BiTrans aggregator
    w64 = w64.at[:H, :H].set(params["agg"]["wdd"])
    w64 = w64.at[H:2 * H, H:2 * H].set(params["agg"]["wdisdr"])
    # rows 2H:4H = fused head weight for [h1 | ins_emb]:
    #   col 0 <- MIL w2 (on h1), col 1 <- bag wbag (on ins_emb), cols 2:2+H/2 <- wins (on drug half)
    w64 = w64.at[2 * H:3 * H, 0:1].set(params["mil"]["w2"])
    w64 = w64.at[3 * H:4 * H, 1:2].set(params["wbag"])
    w64 = w64.at[3 * H:3 * H + H // 2, 2:2 + H // 2].set(params["wins"])

    bias = jnp.zeros((BIAS_ROWS, H), jnp.float32)
    bias = bias.at[0].set(params["lin"]["drug"]["b"][0])
    bias = bias.at[1].set(params["lin"]["disease"]["b"][0])
    for l in range(L):
        bias = bias.at[2 + l].set(params["emb_b"][3 * l + 0][0] + params["emb_b"][3 * l + 1][0])
        bias = bias.at[2 + L + l].set(params["emb_b"][3 * l + 2][0])
    bias = bias.at[BIAS_MIL_ROW].set(params["mil"]["b1"][0])
    for l in range(L):
        bias = bias.at[BIAS_PRELU_ROW, l].set(params["prelu"][l, 0, 0])

    return {"w32": w32, "w64": w64, "bias": bias}


def normalize_adjacency(adj):
    """DGL GraphConv norm='both' applied to the transposed adjacencies (static graph,
    computed once outside the jitted forward)."""
    def norm_t(a):
        at = a.T                                                   # (n_dst, n_src)
        deg_dst = jnp.maximum(jnp.sum(at, axis=1, keepdims=True), 1.0)
        deg_src = jnp.maximum(jnp.sum(at, axis=0, keepdims=True), 1.0)
        return at * jax.lax.rsqrt(deg_dst) * jax.lax.rsqrt(deg_src)

    return {
        "dis_dis": norm_t(adj["disease-disease"]),                 # (n_dis, n_dis)
        "drug_dis": norm_t(adj["drug-disease"]),                   # (n_dis, n_drug)
        "drug_drug": norm_t(adj["drug-drug"]),                     # (n_drug, n_drug)
    }


# ----------------------------- model forward -----------------------------
def model_forward(packed, adj_n, feature, mp_ins):
    """Single fused Pallas kernel for the whole forward pass."""
    B, I, _ = mp_ins.shape
    bi = B * I
    ids = mp_ins.reshape(bi, 4).astype(jnp.int32)
    # stacked index layout: col0 = [drug idx0 ; drug idx1], col1 = [dis idx0 ; dis idx1]
    ids2 = jnp.concatenate(
        [jnp.concatenate([ids[:, 0:1], ids[:, 1:2]], axis=0),
         jnp.concatenate([ids[:, 2:3], ids[:, 3:4]], axis=0)], axis=1)   # (2*bi, 2)

    kernel = functools.partial(
        _fused_forward_kernel, num_layers=NUM_LAYERS, bags=B, insts=I, k=K_TOP)
    vmem = pl.BlockSpec(memory_space=pltpu.MemorySpace.VMEM)

    out_row = pl.pallas_call(
        kernel,
        out_shape=jax.ShapeDtypeStruct((1, B + bi), jnp.float32),
        in_specs=[vmem] * 9,
        out_specs=vmem,
    )(
        feature["drug"], feature["disease"],
        adj_n["dis_dis"], adj_n["drug_dis"], adj_n["drug_drug"],
        ids2,
        packed["w32"], packed["w64"], packed["bias"],
    )
    # TODO(synk): dropout / batchnorm branches of the reference module are inactive
    # (dropout=0.0, bn=False) and therefore not implemented.
    pred = out_row[0, :B].reshape(B, 1)
    attn = out_row[0, B:].reshape(B, I, 1)
    return pred, attn


# ----------------------------------- main -----------------------------------
if __name__ == "__main__":
    key = jax.random.PRNGKey(0)
    (k_param, k_fdr, k_fdis, k_mpdr, k_mpdis,
     k_add, k_adrdis, k_adrdr) = jax.random.split(key, 8)

    params = init_params(k_param)
    packed = jax.tree.map(jax.block_until_ready, pack_params(params))   # pack once, outside jit

    N_DRUG, N_DIS = 12, 10
    B, I = 4, 8   # bags, instances per bag

    feature = {
        "drug": jax.random.normal(k_fdr, (N_DRUG, IN_FEATS["drug"]), jnp.float32),
        "disease": jax.random.normal(k_fdis, (N_DIS, IN_FEATS["disease"]), jnp.float32),
    }
    mp_drug = jax.random.randint(k_mpdr, (B, I, 2), 0, N_DRUG)
    mp_dis = jax.random.randint(k_mpdis, (B, I, 2), 0, N_DIS)
    mp_ins = jnp.concatenate([mp_drug, mp_dis], axis=-1).astype(jnp.int32)

    adj = {
        "disease-disease": (jax.random.uniform(k_add, (N_DIS, N_DIS)) < 0.3
                            ).astype(jnp.float32),
        "drug-disease": (jax.random.uniform(k_adrdis, (N_DRUG, N_DIS)) < 0.3
                         ).astype(jnp.float32),
        "drug-drug": (jax.random.uniform(k_adrdr, (N_DRUG, N_DRUG)) < 0.3
                      ).astype(jnp.float32),
    }
    # static graph -> normalize adjacencies once, outside the jitted forward
    adj_n = jax.tree.map(jax.block_until_ready, normalize_adjacency(adj))

    fwd = jax.jit(model_forward)
    pred, attn = fwd(packed, adj_n, feature, mp_ins)
    jax.block_until_ready((pred, attn))
    assert pred.shape == (B, 1) and attn.shape == (B, I, 1)
    print("KERNEL_OK")
</pallas_src>

<mosaic_0001>
module attributes {stable_mosaic.version = 11 : i64} {
  func.func @_fused_forward_kernel(%arg0: memref<12x24xf32, #tpu.memory_space<vmem>>, %arg1: memref<10x20xf32, #tpu.memory_space<vmem>>, %arg2: memref<10x10xf32, #tpu.memory_space<vmem>>, %arg3: memref<10x12xf32, #tpu.memory_space<vmem>>, %arg4: memref<12x12xf32, #tpu.memory_space<vmem>>, %arg5: memref<64x2xi32, #tpu.memory_space<vmem>>, %arg6: memref<528x32xf32, #tpu.memory_space<vmem>>, %arg7: memref<128x64xf32, #tpu.memory_space<vmem>>, %arg8: memref<8x32xf32, #tpu.memory_space<vmem>>, %arg9: memref<1x36xf32, #tpu.memory_space<vmem>>) attributes {dimension_semantics = [], scalar_prefetch = 0 : i64, scratch_operands = 0 : i64, tpu.core_type = #tpu.core_type<tc>} {
    %c0 = arith.constant 0 : index
    %c0_0 = arith.constant 0 : index
    %0 = vector.load %arg8[%c0, %c0_0] : memref<8x32xf32, #tpu.memory_space<vmem>>, vector<8x32xf32>
    %c0_1 = arith.constant 0 : index
    %c0_2 = arith.constant 0 : index
    %1 = vector.load %arg0[%c0_1, %c0_2] : memref<12x24xf32, #tpu.memory_space<vmem>>, vector<12x24xf32>
    %c0_3 = arith.constant 0 : index
    %c0_4 = arith.constant 0 : index
    %2 = vector.load %arg6[%c0_3, %c0_4] : memref<528x32xf32, #tpu.memory_space<vmem>>, vector<24x32xf32>
    %cst = arith.constant dense<0.000000e+00> : vector<12x32xf32>
    %3 = tpu.matmul %1, %2, %cst {dimension_numbers = #tpu.dot_dimension_numbers<[1], [0], [0], [1], [0, 0, 1, 1], [], []>} : vector<12x24xf32>, vector<24x32xf32>, vector<12x32xf32> -> vector<12x32xf32>
    %4 = vector.extract_strided_slice %0 {offsets = [0, 0], sizes = [1, 32], strides = [1, 1]} : vector<8x32xf32> to vector<1x32xf32>
    %5 = vector.broadcast %4 : vector<1x32xf32> to vector<12x32xf32>
    %6 = arith.addf %3, %5 : vector<12x32xf32>
    %c0_5 = arith.constant 0 : index
    %c0_6 = arith.constant 0 : index
    %7 = vector.load %arg1[%c0_5, %c0_6] : memref<10x20xf32, #tpu.memory_space<vmem>>, vector<10x20xf32>
    %c24 = arith.constant 24 : index
    %c0_7 = arith.constant 0 : index
    %8 = vector.load %arg6[%c24, %c0_7] : memref<528x32xf32, #tpu.memory_space<vmem>>, vector<20x32xf32>
    %cst_8 = arith.constant dense<0.000000e+00> : vector<10x32xf32>
    %9 = tpu.matmul %7, %8, %cst_8 {dimension_numbers = #tpu.dot_dimension_numbers<[1], [0], [0], [1], [0, 0, 1, 1], [], []>} : vector<10x20xf32>, vector<20x32xf32>, vector<10x32xf32> -> vector<10x32xf32>
    %10 = vector.extract_strided_slice %0 {offsets = [1, 0], sizes = [1, 32], strides = [1, 1]} : vector<8x32xf32> to vector<1x32xf32>
    %11 = vector.broadcast %10 : vector<1x32xf32> to vector<10x32xf32>
    %12 = arith.addf %9, %11 : vector<10x32xf32>
    %c0_9 = arith.constant 0 : index
    %c0_10 = arith.constant 0 : index
    %13 = vector.load %arg2[%c0_9, %c0_10] : memref<10x10xf32, #tpu.memory_space<vmem>>, vector<10x10xf32>
    %c0_11 = arith.constant 0 : index
    %c0_12 = arith.constant 0 : index
    %14 = vector.load %arg3[%c0_11, %c0_12] : memref<10x12xf32, #tpu.memory_space<vmem>>, vector<10x12xf32>
    %c0_13 = arith.constant 0 : index
    %c0_14 = arith.constant 0 : index
    %15 = vector.load %arg4[%c0_13, %c0_14] : memref<12x12xf32, #tpu.memory_space<vmem>>, vector<12x12xf32>
    %cst_15 = arith.constant dense<0.000000e+00> : vector<10x32xf32>
    %16 = tpu.matmul %13, %12, %cst_15 {dimension_numbers = #tpu.dot_dimension_numbers<[1], [0], [0], [1], [0, 0, 1, 1], [], []>} : vector<10x10xf32>, vector<10x32xf32>, vector<10x32xf32> -> vector<10x32xf32>
    %cst_16 = arith.constant dense<0.000000e+00> : vector<10x32xf32>
    %17 = tpu.matmul %14, %6, %cst_16 {dimension_numbers = #tpu.dot_dimension_numbers<[1], [0], [0], [1], [0, 0, 1, 1], [], []>} : vector<10x12xf32>, vector<12x32xf32>, vector<10x32xf32> -> vector<10x32xf32>
    %18 = tpu.concatenate %16, %17 in 1 : vector<10x32xf32>, vector<10x32xf32> -> vector<10x64xf32>
    %c48 = arith.constant 48 : index
    %c0_17 = arith.constant 0 : index
    %19 = vector.load %arg6[%c48, %c0_17] : memref<528x32xf32, #tpu.memory_space<vmem>>, vector<64x32xf32>
    %cst_18 = arith.constant dense<0.000000e+00> : vector<10x32xf32>
    %20 = tpu.matmul %18, %19, %cst_18 {dimension_numbers = #tpu.dot_dimension_numbers<[1], [0], [0], [1], [0, 0, 1, 1], [], []>} : vector<10x64xf32>, vector<64x32xf32>, vector<10x32xf32> -> vector<10x32xf32>
    %21 = vector.extract_strided_slice %0 {offsets = [2, 0], sizes = [1, 32], strides = [1, 1]} : vector<8x32xf32> to vector<1x32xf32>
    %22 = vector.broadcast %21 : vector<1x32xf32> to vector<10x32xf32>
    %23 = arith.addf %20, %22 : vector<10x32xf32>
    %cst_19 = arith.constant dense<0.000000e+00> : vector<12x32xf32>
    %24 = tpu.matmul %15, %6, %cst_19 {dimension_numbers = #tpu.dot_dimension_numbers<[1], [0], [0], [1], [0, 0, 1, 1], [], []>} : vector<12x12xf32>, vector<12x32xf32>, vector<12x32xf32> -> vector<12x32xf32>
    %c176 = arith.constant 176 : index
    %c0_20 = arith.constant 0 : index
    %25 = vector.load %arg6[%c176, %c0_20] : memref<528x32xf32, #tpu.memory_space<vmem>>, vector<32x32xf32>
    %cst_21 = arith.constant dense<0.000000e+00> : vector<12x32xf32>
    %26 = tpu.matmul %24, %25, %cst_21 {dimension_numbers = #tpu.dot_dimension_numbers<[1], [0], [0], [1], [0, 0, 1, 1], [], []>} : vector<12x32xf32>, vector<32x32xf32>, vector<12x32xf32> -> vector<12x32xf32>
    %27 = vector.extract_strided_slice %0 {offsets = [4, 0], sizes = [1, 32], strides = [1, 1]} : vector<8x32xf32> to vector<1x32xf32>
    %28 = vector.broadcast %27 : vector<1x32xf32> to vector<12x32xf32>
    %29 = arith.addf %26, %28 : vector<12x32xf32>
    %30 = vector.extract_strided_slice %0 {offsets = [7, 0], sizes = [1, 1], strides = [1, 1]} : vector<8x32xf32> to vector<1x1xf32>
    %cst_22 = arith.constant 0.000000e+00 : f32
    %31 = vector.broadcast %cst_22 : f32 to vector<10x32xf32>
    %32 = arith.cmpf ogt, %23, %31 : vector<10x32xf32>
    %33 = vector.broadcast %30 : vector<1x1xf32> to vector<10x32xf32>
    %34 = arith.mulf %33, %23 : vector<10x32xf32>
    %35 = arith.select %32, %23, %34 : vector<10x32xi1>, vector<10x32xf32>
    %cst_23 = arith.constant 0.000000e+00 : f32
    %36 = vector.broadcast %cst_23 : f32 to vector<12x32xf32>
    %37 = arith.cmpf ogt, %29, %36 : vector<12x32xf32>
    %38 = vector.broadcast %30 : vector<1x1xf32> to vector<12x32xf32>
    %39 = arith.mulf %38, %29 : vector<12x32xf32>
    %40 = arith.select %37, %29, %39 : vector<12x32xi1>, vector<12x32xf32>
    %cst_24 = arith.constant dense<0.000000e+00> : vector<10x32xf32>
    %41 = tpu.matmul %13, %35, %cst_24 {dimension_numbers = #tpu.dot_dimension_numbers<[1], [0], [0], [1], [0, 0, 1, 1], [], []>} : vector<10x10xf32>, vector<10x32xf32>, vector<10x32xf32> -> vector<10x32xf32>
    %cst_25 = arith.constant dense<0.000000e+00> : vector<10x32xf32>
    %42 = tpu.matmul %14, %40, %cst_25 {dimension_numbers = #tpu.dot_dimension_numbers<[1], [0], [0], [1], [0, 0, 1, 1], [], []>} : vector<10x12xf32>, vector<12x32xf32>, vector<10x32xf32> -> vector<10x32xf32>
    %43 = tpu.concatenate %41, %42 in 1 : vector<10x32xf32>, vector<10x32xf32> -> vector<10x64xf32>
    %c112 = arith.constant 112 : index
    %c0_26 = arith.constant 0 : index
    %44 = vector.load %arg6[%c112, %c0_26] : memref<528x32xf32, #tpu.memory_space<vmem>>, vector<64x32xf32>
    %cst_27 = arith.constant dense<0.000000e+00> : vector<10x32xf32>
    %45 = tpu.matmul %43, %44, %cst_27 {dimension_numbers = #tpu.dot_dimension_numbers<[1], [0], [0], [1], [0, 0, 1, 1], [], []>} : vector<10x64xf32>, vector<64x32xf32>, vector<10x32xf32> -> vector<10x32xf32>
    %46 = vector.extract_strided_slice %0 {offsets = [3, 0], sizes = [1, 32], strides = [1, 1]} : vector<8x32xf32> to vector<1x32xf32>
    %47 = vector.broadcast %46 : vector<1x32xf32> to vector<10x32xf32>
    %48 = arith.addf %45, %47 : vector<10x32xf32>
    %cst_28 = arith.constant dense<0.000000e+00> : vector<12x32xf32>
    %49 = tpu.matmul %15, %40, %cst_28 {dimension_numbers = #tpu.dot_dimension_numbers<[1], [0], [0], [1], [0, 0, 1, 1], [], []>} : vector<12x12xf32>, vector<12x32xf32>, vector<12x32xf32> -> vector<12x32xf32>
    %c208 = arith.constant 208 : index
    %c0_29 = arith.constant 0 : index
    %50 = vector.load %arg6[%c208, %c0_29] : memref<528x32xf32, #tpu.memory_space<vmem>>, vector<32x32xf32>
    %cst_30 = arith.constant dense<0.000000e+00> : vector<12x32xf32>
    %51 = tpu.matmul %49, %50, %cst_30 {dimension_numbers = #tpu.dot_dimension_numbers<[1], [0], [0], [1], [0, 0, 1, 1], [], []>} : vector<12x32xf32>, vector<32x32xf32>, vector<12x32xf32> -> vector<12x32xf32>
    %52 = vector.extract_strided_slice %0 {offsets = [5, 0], sizes = [1, 32], strides = [1, 1]} : vector<8x32xf32> to vector<1x32xf32>
    %53 = vector.broadcast %52 : vector<1x32xf32> to vector<12x32xf32>
    %54 = arith.addf %51, %53 : vector<12x32xf32>
    %55 = vector.extract_strided_slice %0 {offsets = [7, 1], sizes = [1, 1], strides = [1, 1]} : vector<8x32xf32> to vector<1x1xf32>
    %cst_31 = arith.constant 0.000000e+00 : f32
    %56 = vector.broadcast %cst_31 : f32 to vector<10x32xf32>
    %57 = arith.cmpf ogt, %48, %56 : vector<10x32xf32>
    %58 = vector.broadcast %55 : vector<1x1xf32> to vector<10x32xf32>
    %59 = arith.mulf %58, %48 : vector<10x32xf32>
    %60 = arith.select %57, %48, %59 : vector<10x32xi1>, vector<10x32xf32>
    %cst_32 = arith.constant 0.000000e+00 : f32
    %61 = vector.broadcast %cst_32 : f32 to vector<12x32xf32>
    %62 = arith.cmpf ogt, %54, %61 : vector<12x32xf32>
    %63 = vector.broadcast %55 : vector<1x1xf32> to vector<12x32xf32>
    %64 = arith.mulf %63, %54 : vector<12x32xf32>
    %65 = arith.select %62, %54, %64 : vector<12x32xi1>, vector<12x32xf32>
    %66 = tpu.concatenate %6, %40, %65 in 1 : vector<12x32xf32>, vector<12x32xf32>, vector<12x32xf32> -> vector<12x96xf32>
    %c240 = arith.constant 240 : index
    %c0_33 = arith.constant 0 : index
    %67 = vector.load %arg6[%c240, %c0_33] : memref<528x32xf32, #tpu.memory_space<vmem>>, vector<96x32xf32>
    %cst_34 = arith.constant dense<0.000000e+00> : vector<12x32xf32>
    %68 = tpu.matmul %66, %67, %cst_34 {dimension_numbers = #tpu.dot_dimension_numbers<[1], [0], [0], [1], [0, 0, 1, 1], [], []>} : vector<12x96xf32>, vector<96x32xf32>, vector<12x32xf32> -> vector<12x32xf32>
    %69 = tpu.concatenate %12, %35, %60 in 1 : vector<10x32xf32>, vector<10x32xf32>, vector<10x32xf32> -> vector<10x96xf32>
    %c336 = arith.constant 336 : index
    %c0_35 = arith.constant 0 : index
    %70 = vector.load %arg6[%c336, %c0_35] : memref<528x32xf32, #tpu.memory_space<vmem>>, vector<96x32xf32>
    %cst_36 = arith.constant dense<0.000000e+00> : vector<10x32xf32>
    %71 = tpu.matmul %69, %70, %cst_36 {dimension_numbers = #tpu.dot_dimension_numbers<[1], [0], [0], [1], [0, 0, 1, 1], [], []>} : vector<10x96xf32>, vector<96x32xf32>, vector<10x32xf32> -> vector<10x32xf32>
    %c0_37 = arith.constant 0 : index
    %c0_38 = arith.constant 0 : index
    %72 = vector.load %arg5[%c0_37, %c0_38] : memref<64x2xi32, #tpu.memory_space<vmem>>, vector<64x2xi32>
    %73 = tpu.iota {dimensions = array<i32: 1>} : vector<64x12xi32>
    %74 = vector.extract_strided_slice %72 {offsets = [0, 0], sizes = [64, 1], strides = [1, 1]} : vector<64x2xi32> to vector<64x1xi32>
    %75 = vector.broadcast %74 : vector<64x1xi32> to vector<64x12xi32>
    %76 = arith.cmpi eq, %75, %73 : vector<64x12xi32>
    %cst_39 = arith.constant 1.000000e+00 : f32
    %cst_40 = arith.constant 0.000000e+00 : f32
    %77 = vector.broadcast %cst_39 : f32 to vector<64x12xf32>
    %78 = vector.broadcast %cst_40 : f32 to vector<64x12xf32>
    %79 = arith.select %76, %77, %78 : vector<64x12xi1>, vector<64x12xf32>
    %cst_41 = arith.constant dense<0.000000e+00> : vector<64x32xf32>
    %80 = tpu.matmul %79, %68, %cst_41 {dimension_numbers = #tpu.dot_dimension_numbers<[1], [0], [0], [1], [0, 0, 1, 1], [], []>} : vector<64x12xf32>, vector<12x32xf32>, vector<64x32xf32> -> vector<64x32xf32>
    %81 = tpu.iota {dimensions = array<i32: 1>} : vector<64x10xi32>
    %82 = vector.extract_strided_slice %72 {offsets = [0, 1], sizes = [64, 1], strides = [1, 1]} : vector<64x2xi32> to vector<64x1xi32>
    %83 = vector.broadcast %82 : vector<64x1xi32> to vector<64x10xi32>
    %84 = arith.cmpi eq, %83, %81 : vector<64x10xi32>
    %cst_42 = arith.constant 1.000000e+00 : f32
    %cst_43 = arith.constant 0.000000e+00 : f32
    %85 = vector.broadcast %cst_42 : f32 to vector<64x10xf32>
    %86 = vector.broadcast %cst_43 : f32 to vector<64x10xf32>
    %87 = arith.select %84, %85, %86 : vector<64x10xi1>, vector<64x10xf32>
    %cst_44 = arith.constant dense<0.000000e+00> : vector<64x32xf32>
    %88 = tpu.matmul %87, %71, %cst_44 {dimension_numbers = #tpu.dot_dimension_numbers<[1], [0], [0], [1], [0, 0, 1, 1], [], []>} : vector<64x10xf32>, vector<10x32xf32>, vector<64x32xf32> -> vector<64x32xf32>
    %89 = vector.extract_strided_slice %80 {offsets = [0, 0], sizes = [32, 32], strides = [1, 1]} : vector<64x32xf32> to vector<32x32xf32>
    %90 = vector.extract_strided_slice %80 {offsets = [32, 0], sizes = [32, 32], strides = [1, 1]} : vector<64x32xf32> to vector<32x32xf32>
    %91 = vector.extract_strided_slice %88 {offsets = [0, 0], sizes = [32, 32], strides = [1, 1]} : vector<64x32xf32> to vector<32x32xf32>
    %92 = vector.extract_strided_slice %88 {offsets = [32, 0], sizes = [32, 32], strides = [1, 1]} : vector<64x32xf32> to vector<32x32xf32>
    %93 = arith.addf %89, %90 : vector<32x32xf32>
    %cst_45 = arith.constant 5.000000e-01 : f32
    %94 = vector.broadcast %cst_45 : f32 to vector<32x32xf32>
    %95 = arith.mulf %93, %94 : vector<32x32xf32>
    %96 = arith.addf %92, %91 : vector<32x32xf32>
    %cst_46 = arith.constant 5.000000e-01 : f32
    %97 = vector.broadcast %cst_46 : f32 to vector<32x32xf32>
    %98 = arith.mulf %96, %97 : vector<32x32xf32>
    %99 = tpu.concatenate %95, %98 in 1 : vector<32x32xf32>, vector<32x32xf32> -> vector<32x64xf32>
    %c0_47 = arith.constant 0 : index
    %c0_48 = arith.constant 0 : index
    %100 = vector.load %arg7[%c0_47, %c0_48] : memref<128x64xf32, #tpu.memory_space<vmem>>, vector<64x64xf32>
    %cst_49 = arith.constant dense<0.000000e+00> : vector<32x64xf32>
    %101 = tpu.matmul %99, %100, %cst_49 {dimension_numbers = #tpu.dot_dimension_numbers<[1], [0], [0], [1], [0, 0, 1, 1], [], []>} : vector<32x64xf32>, vector<64x64xf32>, vector<32x64xf32> -> vector<32x64xf32>
    %102 = vector.extract_strided_slice %101 {offsets = [0, 0], sizes = [32, 32], strides = [1, 1]} : vector<32x64xf32> to vector<32x32xf32>
    %103 = arith.addf %102, %91 : vector<32x32xf32>
    %cst_50 = arith.constant 5.000000e-01 : f32
    %104 = vector.broadcast %cst_50 : f32 to vector<32x32xf32>
    %105 = arith.mulf %103, %104 : vector<32x32xf32>
    %106 = arith.addf %105, %92 : vector<32x32xf32>
    %cst_51 = arith.constant 5.000000e-01 : f32
    %107 = vector.broadcast %cst_51 : f32 to vector<32x32xf32>
    %108 = arith.mulf %106, %107 : vector<32x32xf32>
    %109 = vector.extract_strided_slice %101 {offsets = [0, 32], sizes = [32, 32], strides = [1, 1]} : vector<32x64xf32> to vector<32x32xf32>
    %110 = arith.addf %109, %90 : vector<32x32xf32>
    %cst_52 = arith.constant 5.000000e-01 : f32
    %111 = vector.broadcast %cst_52 : f32 to vector<32x32xf32>
    %112 = arith.mulf %110, %111 : vector<32x32xf32>
    %113 = arith.addf %112, %89 : vector<32x32xf32>
    %cst_53 = arith.constant 5.000000e-01 : f32
    %114 = vector.broadcast %cst_53 : f32 to vector<32x32xf32>
    %115 = arith.mulf %113, %114 : vector<32x32xf32>
    %116 = tpu.concatenate %115, %108 in 1 : vector<32x32xf32>, vector<32x32xf32> -> vector<32x64xf32>
    %c432 = arith.constant 432 : index
    %c0_54 = arith.constant 0 : index
    %117 = vector.load %arg6[%c432, %c0_54] : memref<528x32xf32, #tpu.memory_space<vmem>>, vector<64x32xf32>
    %cst_55 = arith.constant dense<0.000000e+00> : vector<32x32xf32>
    %118 = tpu.matmul %116, %117, %cst_55 {dimension_numbers = #tpu.dot_dimension_numbers<[1], [0], [0], [1], [0, 0, 1, 1], [], []>} : vector<32x64xf32>, vector<64x32xf32>, vector<32x32xf32> -> vector<32x32xf32>
    %c496 = arith.constant 496 : index
    %c0_56 = arith.constant 0 : index
    %119 = vector.load %arg6[%c496, %c0_56] : memref<528x32xf32, #tpu.memory_space<vmem>>, vector<32x32xf32>
    %cst_57 = arith.constant dense<0.000000e+00> : vector<32x32xf32>
    %120 = tpu.matmul %118, %119, %cst_57 {dimension_numbers = #tpu.dot_dimension_numbers<[1], [0], [0], [1], [0, 0, 1, 1], [], []>} : vector<32x32xf32>, vector<32x32xf32>, vector<32x32xf32> -> vector<32x32xf32>
    %121 = vector.extract_strided_slice %0 {offsets = [6, 0], sizes = [1, 32], strides = [1, 1]} : vector<8x32xf32> to vector<1x32xf32>
    %122 = vector.broadcast %121 : vector<1x32xf32> to vector<32x32xf32>
    %123 = arith.addf %120, %122 : vector<32x32xf32>
    %124 = math.tanh %123 : vector<32x32xf32>
    %125 = tpu.concatenate %124, %118 in 1 : vector<32x32xf32>, vector<32x32xf32> -> vector<32x64xf32>
    %c64 = arith.constant 64 : index
    %c0_58 = arith.constant 0 : index
    %126 = vector.load %arg7[%c64, %c0_58] : memref<128x64xf32, #tpu.memory_space<vmem>>, vector<64x64xf32>
    %cst_59 = arith.constant dense<0.000000e+00> : vector<32x64xf32>
    %127 = tpu.matmul %125, %126, %cst_59 {dimension_numbers = #tpu.dot_dimension_numbers<[1], [0], [0], [1], [0, 0, 1, 1], [], []>} : vector<32x64xf32>, vector<64x64xf32>, vector<32x64xf32> -> vector<32x64xf32>
    %128 = vector.extract_strided_slice %127 {offsets = [0, 0], sizes = [32, 1], strides = [1, 1]} : vector<32x64xf32> to vector<32x1xf32>
    %129 = vector.extract_strided_slice %127 {offsets = [0, 1], sizes = [32, 1], strides = [1, 1]} : vector<32x64xf32> to vector<32x1xf32>
    %130 = vector.extract_strided_slice %127 {offsets = [0, 2], sizes = [32, 16], strides = [1, 1]} : vector<32x64xf32> to vector<32x16xf32>
    %131 = vector.extract_strided_slice %118 {offsets = [0, 16], sizes = [32, 16], strides = [1, 1]} : vector<32x32xf32> to vector<32x16xf32>
    %132 = arith.mulf %130, %131 : vector<32x16xf32>
    %cst_60 = arith.constant dense<0.000000e+00> : vector<32xf32>
    %133 = vector.multi_reduction <add>, %132, %cst_60 [1] : vector<32x16xf32> to vector<32xf32>
    %134 = vector.shape_cast %133 : vector<32xf32> to vector<32x1xf32>
    %135 = tpu.iota {dimensions = array<i32: 0>} : vector<32x4xi32>
    %136 = tpu.iota {dimensions = array<i32: 1>} : vector<32x4xi32>
    %c8_i32 = arith.constant 8 : i32
    %137 = vector.broadcast %c8_i32 : i32 to vector<32x4xi32>
    %138 = arith.muli %136, %137 : vector<32x4xi32>
    %139 = arith.cmpi sge, %135, %138 : vector<32x4xi32>
    %c1_i32 = arith.constant 1 : i32
    %140 = vector.broadcast %c1_i32 : i32 to vector<32x4xi32>
    %141 = arith.addi %136, %140 : vector<32x4xi32>
    %c8_i32_61 = arith.constant 8 : i32
    %142 = vector.broadcast %c8_i32_61 : i32 to vector<32x4xi32>
    %143 = arith.muli %141, %142 : vector<32x4xi32>
    %144 = arith.cmpi slt, %135, %143 : vector<32x4xi32>
    %145 = arith.andi %139, %144 : vector<32x4xi1>
    %cst_62 = arith.constant -1.000000e+30 : f32
    %146 = vector.shape_cast %128 : vector<32x1xf32> to vector<32x1xf32>
    %147 = vector.broadcast %146 : vector<32x1xf32> to vector<32x4xf32>
    %148 = vector.broadcast %cst_62 : f32 to vector<32x4xf32>
    %149 = arith.select %145, %147, %148 : vector<32x4xi1>, vector<32x4xf32>
    %cst_63 = arith.constant dense<0xFF800000> : vector<4xf32>
    %150 = vector.multi_reduction <maximumf>, %149, %cst_63 [0] : vector<32x4xf32> to vector<4xf32>
    %151 = vector.shape_cast %150 : vector<4xf32> to vector<1x4xf32>
    %cst_64 = arith.constant 0.000000e+00 : f32
    %152 = vector.shape_cast %151 : vector<1x4xf32> to vector<1x4xf32>
    %153 = vector.broadcast %152 : vector<1x4xf32> to vector<32x4xf32>
    %154 = vector.broadcast %cst_64 : f32 to vector<32x4xf32>
    %155 = arith.select %145, %153, %154 : vector<32x4xi1>, vector<32x4xf32>
    %cst_65 = arith.constant dense<0.000000e+00> : vector<32xf32>
    %156 = vector.multi_reduction <add>, %155, %cst_65 [1] : vector<32x4xf32> to vector<32xf32>
    %157 = vector.shape_cast %156 : vector<32xf32> to vector<32x1xf32>
    %158 = arith.subf %128, %157 : vector<32x1xf32>
    %159 = math.exp %158 : vector<32x1xf32>
    %cst_66 = arith.constant 0.000000e+00 : f32
    %160 = vector.shape_cast %159 : vector<32x1xf32> to vector<32x1xf32>
    %161 = vector.broadcast %160 : vector<32x1xf32> to vector<32x4xf32>
    %162 = vector.broadcast %cst_66 : f32 to vector<32x4xf32>
    %163 = arith.select %145, %161, %162 : vector<32x4xi1>, vector<32x4xf32>
    %cst_67 = arith.constant dense<0.000000e+00> : vector<4xf32>
    %164 = vector.multi_reduction <add>, %163, %cst_67 [0] : vector<32x4xf32> to vector<4xf32>
    %165 = vector.shape_cast %164 : vector<4xf32> to vector<1x4xf32>
    %cst_68 = arith.constant 0.000000e+00 : f32
    %166 = vector.shape_cast %165 : vector<1x4xf32> to vector<1x4xf32>
    %167 = vector.broadcast %166 : vector<1x4xf32> to vector<32x4xf32>
    %168 = vector.broadcast %cst_68 : f32 to vector<32x4xf32>
    %169 = arith.select %145, %167, %168 : vector<32x4xi1>, vector<32x4xf32>
    %cst_69 = arith.constant dense<0.000000e+00> : vector<32xf32>
    %170 = vector.multi_reduction <add>, %169, %cst_69 [1] : vector<32x4xf32> to vector<32xf32>
    %171 = vector.shape_cast %170 : vector<32xf32> to vector<32x1xf32>
    %172 = tpu.reciprocal %171 {approx = true} : vector<32x1xf32> -> vector<32x1xf32>
    %173 = arith.mulf %159, %172 : vector<32x1xf32>
    %174 = arith.mulf %173, %129 : vector<32x1xf32>
    %cst_70 = arith.constant 0.000000e+00 : f32
    %175 = vector.shape_cast %174 : vector<32x1xf32> to vector<32x1xf32>
    %176 = vector.broadcast %175 : vector<32x1xf32> to vector<32x4xf32>
    %177 = vector.broadcast %cst_70 : f32 to vector<32x4xf32>
    %178 = arith.select %145, %176, %177 : vector<32x4xi1>, vector<32x4xf32>
    %cst_71 = arith.constant dense<0.000000e+00> : vector<4xf32>
    %179 = vector.multi_reduction <add>, %178, %cst_71 [0] : vector<32x4xf32> to vector<4xf32>
    %180 = vector.shape_cast %179 : vector<4xf32> to vector<1x4xf32>
    %181 = arith.mulf %173, %134 : vector<32x1xf32>
    %cst_72 = arith.constant -1.000000e+30 : f32
    %182 = vector.shape_cast %181 : vector<32x1xf32> to vector<32x1xf32>
    %183 = vector.broadcast %182 : vector<32x1xf32> to vector<32x4xf32>
    %184 = vector.broadcast %cst_72 : f32 to vector<32x4xf32>
    %185 = arith.select %145, %183, %184 : vector<32x4xi1>, vector<32x4xf32>
    %cst_73 = arith.constant 0.000000e+00 : f32
    %186 = vector.broadcast %cst_73 : f32 to vector<1x4xf32>
    %cst_74 = arith.constant dense<0xFF800000> : vector<4xf32>
    %187 = vector.multi_reduction <maximumf>, %185, %cst_74 [0] : vector<32x4xf32> to vector<4xf32>
    %188 = vector.shape_cast %187 : vector<4xf32> to vector<1x4xf32>
    %189 = vector.broadcast %188 : vector<1x4xf32> to vector<32x4xf32>
    %190 = arith.cmpf oeq, %185, %189 : vector<32x4xf32>
    %c32_i32 = arith.constant 32 : i32
    %191 = vector.broadcast %c32_i32 : i32 to vector<32x4xi32>
    %192 = arith.select %190, %135, %191 : vector<32x4xi1>, vector<32x4xi32>
    %cst_75 = arith.constant dense<2147483647> : vector<4xi32>
    %193 = vector.multi_reduction <minsi>, %192, %cst_75 [0] : vector<32x4xi32> to vector<4xi32>
    %194 = vector.shape_cast %193 : vector<4xi32> to vector<1x4xi32>
    %195 = arith.addf %186, %188 : vector<1x4xf32>
    %196 = vector.broadcast %194 : vector<1x4xi32> to vector<32x4xi32>
    %197 = arith.cmpi eq, %135, %196 : vector<32x4xi32>
    %cst_76 = arith.constant -1.000000e+30 : f32
    %198 = vector.broadcast %cst_76 : f32 to vector<32x4xf32>
    %199 = arith.select %197, %198, %185 : vector<32x4xi1>, vector<32x4xf32>
    %cst_77 = arith.constant dense<0xFF800000> : vector<4xf32>
    %200 = vector.multi_reduction <maximumf>, %199, %cst_77 [0] : vector<32x4xf32> to vector<4xf32>
    %201 = vector.shape_cast %200 : vector<4xf32> to vector<1x4xf32>
    %202 = vector.broadcast %201 : vector<1x4xf32> to vector<32x4xf32>
    %203 = arith.cmpf oeq, %199, %202 : vector<32x4xf32>
    %c32_i32_78 = arith.constant 32 : i32
    %204 = vector.broadcast %c32_i32_78 : i32 to vector<32x4xi32>
    %205 = arith.select %203, %135, %204 : vector<32x4xi1>, vector<32x4xi32>
    %cst_79 = arith.constant dense<2147483647> : vector<4xi32>
    %206 = vector.multi_reduction <minsi>, %205, %cst_79 [0] : vector<32x4xi32> to vector<4xi32>
    %207 = vector.shape_cast %206 : vector<4xi32> to vector<1x4xi32>
    %208 = arith.addf %195, %201 : vector<1x4xf32>
    %209 = vector.broadcast %207 : vector<1x4xi32> to vector<32x4xi32>
    %210 = arith.cmpi eq, %135, %209 : vector<32x4xi32>
    %cst_80 = arith.constant -1.000000e+30 : f32
    %211 = vector.broadcast %cst_80 : f32 to vector<32x4xf32>
    %212 = arith.select %210, %211, %199 : vector<32x4xi1>, vector<32x4xf32>
    %cst_81 = arith.constant dense<0xFF800000> : vector<4xf32>
    %213 = vector.multi_reduction <maximumf>, %212, %cst_81 [0] : vector<32x4xf32> to vector<4xf32>
    %214 = vector.shape_cast %213 : vector<4xf32> to vector<1x4xf32>
    %215 = arith.addf %208, %214 : vector<1x4xf32>
    %cst_82 = arith.constant 0.333333343 : f32
    %216 = vector.broadcast %cst_82 : f32 to vector<1x4xf32>
    %217 = arith.mulf %215, %216 : vector<1x4xf32>
    %218 = arith.addf %217, %180 : vector<1x4xf32>
    %cst_83 = arith.constant 5.000000e-01 : f32
    %219 = vector.broadcast %cst_83 : f32 to vector<1x4xf32>
    %220 = arith.mulf %218, %219 : vector<1x4xf32>
    %221 = tpu.iota {dimensions = array<i32: 0>} : vector<32x32xi32>
    %222 = tpu.iota {dimensions = array<i32: 1>} : vector<32x32xi32>
    %223 = arith.cmpi eq, %221, %222 : vector<32x32xi32>
    %cst_84 = arith.constant 0.000000e+00 : f32
    %224 = vector.shape_cast %173 : vector<32x1xf32> to vector<32x1xf32>
    %225 = vector.broadcast %224 : vector<32x1xf32> to vector<32x32xf32>
    %226 = vector.broadcast %cst_84 : f32 to vector<32x32xf32>
    %227 = arith.select %223, %225, %226 : vector<32x32xi1>, vector<32x32xf32>
    %cst_85 = arith.constant dense<0.000000e+00> : vector<32xf32>
    %228 = vector.multi_reduction <add>, %227, %cst_85 [0] : vector<32x32xf32> to vector<32xf32>
    %229 = vector.shape_cast %228 : vector<32xf32> to vector<1x32xf32>
    %230 = tpu.concatenate %220, %229 in 1 : vector<1x4xf32>, vector<1x32xf32> -> vector<1x36xf32>
    %c0_86 = arith.constant 0 : index
    %c0_87 = arith.constant 0 : index
    %231 = vector.load %arg9[%c0_86, %c0_87] : memref<1x36xf32, #tpu.memory_space<vmem>>, vector<1x36xf32>
    tpu.vector_store %arg9[%c0_86, %c0_87], %230 {strides = array<i32>} : memref<1x36xf32, #tpu.memory_space<vmem>>, vector<1x36xf32>,
    return
  }
}

</mosaic_0001>

<llo_original>
// kernel: squeeze.3
$region0: #{squeeze.3}
  %s0 = inlined_call_operand.vmem [shape: f32[32], index: 0, kind: input, shape index: {}]
  %s1 = inlined_call_operand.hbm [shape: f32[4,8,1], index: 1, kind: output, shape index: {}]
  $region1: #{squeeze.3} parent=0
    #allocation0 [shape = 'u8[2048]{0}', space=vmem, size = 0x800, scoped, tag = 'operand span for operand 1']
    #allocation1 [shape = 's32[1]{0}', space=sflag, size = 0x4, scoped, tag = 'scoped memory for squeeze.3']
    #allocation2 [shape = 'u8[4096]{0}', space=vmem, size = 0x1000, scoped, tag = 'scoped mem for output reshape']
    #allocation3 [shape = 'u8[4096]{0}', space=vmem, size = 0x1000, scoped, tag = 'scoped mem for input reshape']
    %2 = vsyncpa [#allocation1], 0
    %s4 = ssub.s32 2, 1
    %v5 = vld [vmem:[%s0] sm:%s4]
    %6 = vst [vmem:[#allocation3] sm:%s4] %v5
    %v7 = vld [vmem:[#allocation3] sm:$0x1]
    %vm8 = vcmask 64512
    %9 = vst.msk [vmem:[#allocation2] sm:$0x1] %vm8, %v7
    %v10 = vld [vmem:[#allocation3] sm:$0x1]
    %11 = vrot.lane.b32.xlu0 %v10, 120
    %v12 = vpop.permute.xlu0 %11
    %vm13 = vcmask 64512
    %s14 = scalar_lea.vmem [#allocation2], 1
    %15 = vst.msk [vmem:[%s14] sm:$0x1] %vm13, %v12
    %v16 = vld [vmem:[#allocation3] sm:$0x1]
    %17 = vrot.lane.b32.xlu0 %v16, 112
    %v18 = vpop.permute.xlu0 %17
    %vm19 = vcmask 64512
    %s20 = scalar_lea.vmem [#allocation2], 2
    %21 = vst.msk [vmem:[%s20] sm:$0x1] %vm19, %v18
    %v22 = vld [vmem:[#allocation3] sm:$0x1]
    %23 = vrot.lane.b32.xlu0 %v22, 104
    %v24 = vpop.permute.xlu0 %23
    %vm25 = vcmask 64512
    %s26 = scalar_lea.vmem [#allocation2], 3
    %27 = vst.msk [vmem:[%s26] sm:$0x1] %vm25, %v24
    %s29 = ssub.s32 16, 1
    %v30 = vld [vmem:[#allocation2] sm:%s29]
    %s32 = ssub.s32 16, 1
    %33 = vst [vmem:[#allocation0] sm:%s32] %v30
    %35 = vsyncadd [#allocation1], 0
    %s37 = sshll.u32 [#allocation0], 4
    %s38 = int_to_ptr.vmem [resolvable:$true] %s37
    %s39 = sshll.u32 %s1, 4
    %s40 = int_to_ptr.hbm [resolvable:$true] %s39
    %42 = dma.vmem_to_hbm [thread:$0]  %s38, 64, %s40, [#allocation1]
    %44 = dma.done [#allocation1], 64
    %45 = vsyncpa [#allocation1], 1

// kernel: model_forward.1
$region0: #{model_forward.1}
  #allocation0 [shape = 'u32[]', space=smem, size = 0x4, offset = 0x4, fixed_abs, tag = 'smem constant byte address 0x4 - core index']
  #allocation1 [shape = 'u32[72,128]{1,0:T(1,128)}', space=vmem, size = 0x9000, scoped, tag = 'internal scratch']
  %s0 = inlined_call_operand.vmem [shape: f32[12,24], index: 0, kind: input, shape index: {}]
  %s1 = inlined_call_operand.vmem [shape: f32[10,20], index: 1, kind: input, shape index: {}]
  %s2 = inlined_call_operand.vmem [shape: f32[10,10], index: 2, kind: input, shape index: {}]
  %s3 = inlined_call_operand.vmem [shape: f32[10,12], index: 3, kind: input, shape index: {}]
  %s4 = inlined_call_operand.vmem [shape: f32[12,12], index: 4, kind: input, shape index: {}]
  %s5 = inlined_call_operand.vmem [shape: s32[64,2], index: 5, kind: input, shape index: {}]
  %s6 = inlined_call_operand.vmem [shape: f32[528,32], index: 6, kind: input, shape index: {}]
  %s7 = inlined_call_operand.vmem [shape: f32[128,64], index: 7, kind: input, shape index: {}]
  %s8 = inlined_call_operand.vmem [shape: f32[8,32], index: 8, kind: input, shape index: {}]
  %s9 = inlined_call_operand.vmem [shape: f32[1,36], index: 9, kind: output, shape index: {}]
  %s10 = sld [smem:[#allocation0]]
  $region46: #{model_forward.1} parent=0
    _
  %s12 = ssub.s32 1, %s10
  %s13 = scalar_select 0, %s12, %s10
  // Predicated region
  $region2: #{model_forward.1} parent=0 // pred_check
    _
  $region3: #{model_forward.1} parent=0 // pred_check_branch
    %15 = sbr.rel (0) target = $region5
  $region4: #{model_forward.1} parent=0 // pred_region
    _
  $region5: #{model_forward.1} parent=0 // pred_fallthru
    _
  // Predicated region
  $region6: #{model_forward.1} parent=0 // pred_check
    _
  $region7: #{model_forward.1} parent=0 // pred_check_branch
    %17 = sbr.rel (0) target = $region9
  $region8: #{model_forward.1} parent=0 // pred_region
    _
  $region9: #{model_forward.1} parent=0 // pred_fallthru
    _
  // Predicated region
  $region10: #{model_forward.1} parent=0 // pred_check
    _
  $region11: #{model_forward.1} parent=0 // pred_check_branch
    %19 = sbr.rel (0) target = $region13
  $region12: #{model_forward.1} parent=0 // pred_region
    _
  $region13: #{model_forward.1} parent=0 // pred_fallthru
    _
  // Predicated region
  $region14: #{model_forward.1} parent=0 // pred_check
    _
  $region15: #{model_forward.1} parent=0 // pred_check_branch
    %21 = sbr.rel (0) target = $region17
  $region16: #{model_forward.1} parent=0 // pred_region
    _
  $region17: #{model_forward.1} parent=0 // pred_fallthru
    _
  // Predicated region
  $region18: #{model_forward.1} parent=0 // pred_check
    _
  $region19: #{model_forward.1} parent=0 // pred_check_branch
    %23 = sbr.rel (0) target = $region21
  $region20: #{model_forward.1} parent=0 // pred_region
    _
  $region21: #{model_forward.1} parent=0 // pred_fallthru
    _
  // Predicated region
  $region22: #{model_forward.1} parent=0 // pred_check
    _
  $region23: #{model_forward.1} parent=0 // pred_check_branch
    %25 = sbr.rel (0) target = $region25
  $region24: #{model_forward.1} parent=0 // pred_region
    _
  $region25: #{model_forward.1} parent=0 // pred_fallthru
    _
  // Predicated region
  $region26: #{model_forward.1} parent=0 // pred_check
    _
  $region27: #{model_forward.1} parent=0 // pred_check_branch
    %27 = sbr.rel (0) target = $region29
  $region28: #{model_forward.1} parent=0 // pred_region
    _
  $region29: #{model_forward.1} parent=0 // pred_fallthru
    _
  // Predicated region
  $region30: #{model_forward.1} parent=0 // pred_check
    _
  $region31: #{model_forward.1} parent=0 // pred_check_branch
    %29 = sbr.rel (0) target = $region33
  $region32: #{model_forward.1} parent=0 // pred_region
    _
  $region33: #{model_forward.1} parent=0 // pred_fallthru
    _
  // Predicated region
  $region34: #{model_forward.1} parent=0 // pred_check
    _
  $region35: #{model_forward.1} parent=0 // pred_check_branch
    %31 = sbr.rel (0) target = $region37
  $region36: #{model_forward.1} parent=0 // pred_region
    _
  $region37: #{model_forward.1} parent=0 // pred_fallthru
    _
  %v32 = vld [vmem:[%s8] sm:$0xff]
  %v33 = vld [vmem:[%s0] sm:$0xff]
  %v34 = vld [vmem:[%s0 + $0x8] sm:$0xf]
  %v35 = vld [vmem:[%s6] sm:$0xff]
  %v36 = vld [vmem:[%s6 + $0x8] sm:$0xff]
  %v37 = vld [vmem:[%s6 + $0x10] sm:$0xff]
  %v38 = vperm.slane %v32, 0
  %vm39 = vcmask 195584
  %v41 = vsel %vm39, %v33, 0
  %v44 = vsel %vm39, %v34, 0
  %46 = vmatpush.msra.mxu0 0.0
  %47 = vmatpush.msra.mxu0 0.0
  %48 = vmatpush.msra.mxu0 0.0
  %49 = vmatpush.msra.mxu0 0.0
  %50 = vmatpush.msra.mxu0 0.0
  %51 = vmatpush.msra.mxu0 0.0
  %52 = vmatpush.msra.mxu0 0.0
  %53 = vmatpush.msra.mxu0 0.0
  %54 = vmatpush.msra.mxu0 0.0
  %55 = vmatpush.msra.mxu0 0.0
  %56 = vmatpush.msra.mxu0 0.0
  %57 = vmatpush.msra.mxu0 0.0
  %58 = vmatpush.msra.mxu0 0.0
  %59 = vmatpush.msra.mxu0 %v37
  %60 = vmatpush.msra.mxu0 %v36
  %61 = vmatpush.msra.mxu0 %v35
  %62 = vmatmul.f32.gmra.mxu0 %v41
  %v63 = vpop.f32.mrf.mxu0
  %v64 = vadd.f32 %v38, %v63
  %65 = vmatmul.f32.gmra.mxu0 %v44
  %v66 = vpop.f32.mrf.mxu0
  %v67 = vadd.f32 %v38, %v66
  %68 = vdwg.mxu0
  %v69 = vld [vmem:[%s1] sm:$0xff]
  %v70 = vld [vmem:[%s1 + $0x8] sm:$0x3]
  %v71 = vld [vmem:[%s6 + $0x18] sm:$0xff]
  %v72 = vld [vmem:[%s6 + $0x20] sm:$0xff]
  %v73 = vld [vmem:[%s6 + $0x28] sm:$0xf]
  %v74 = vperm.slane %v32, 1
  %vm75 = vcmask 162816
  %v77 = vsel %vm75, %v69, 0
  %v80 = vsel %vm75, %v70, 0
  %vm82 = vcmask 1043456
  %v84 = vsel %vm82, %v73, 0
  %86 = vmatpush.msra.mxu0 0.0
  %87 = vmatpush.msra.mxu0 0.0
  %88 = vmatpush.msra.mxu0 0.0
  %89 = vmatpush.msra.mxu0 0.0
  %90 = vmatpush.msra.mxu0 0.0
  %91 = vmatpush.msra.mxu0 0.0
  %92 = vmatpush.msra.mxu0 0.0
  %93 = vmatpush.msra.mxu0 0.0
  %94 = vmatpush.msra.mxu0 0.0
  %95 = vmatpush.msra.mxu0 0.0
  %96 = vmatpush.msra.mxu0 0.0
  %97 = vmatpush.msra.mxu0 0.0
  %98 = vmatpush.msra.mxu0 0.0
  %99 = vmatpush.msra.mxu0 %v84
  %100 = vmatpush.msra.mxu0 %v72
  %101 = vmatpush.msra.mxu0 %v71
  %102 = vmatmul.f32.gmra.mxu0 %v77
  %v103 = vpop.f32.mrf.mxu0
  %v104 = vadd.f32 %v74, %v103
  %105 = vmatmul.f32.gmra.mxu0 %v80
  %v106 = vpop.f32.mrf.mxu0
  %v107 = vadd.f32 %v74, %v106
  %108 = vdwg.mxu0
  %v109 = vld [vmem:[%s2] sm:$0xff]
  %v110 = vld [vmem:[%s2 + $0x8] sm:$0x3]
  %v111 = vld [vmem:[%s3] sm:$0xff]
  %v112 = vld [vmem:[%s3 + $0x8] sm:$0x3]
  %v113 = vld [vmem:[%s4] sm:$0xff]
  %v114 = vld [vmem:[%s4 + $0x8] sm:$0xf]
  %vm115 = vcmask 80896
  %v117 = vsel %vm115, %v109, 0
  %v120 = vsel %vm115, %v110, 0
  %vm122 = vcmask 1041408
  %v124 = vsel %vm122, %v107, 0
  %126 = vmatpush.msra.mxu0 0.0
  %127 = vmatpush.msra.mxu0 0.0
  %128 = vmatpush.msra.mxu0 0.0
  %129 = vmatpush.msra.mxu0 0.0
  %130 = vmatpush.msra.mxu0 0.0
  %131 = vmatpush.msra.mxu0 0.0
  %132 = vmatpush.msra.mxu0 0.0
  %133 = vmatpush.msra.mxu0 0.0
  %134 = vmatpush.msra.mxu0 0.0
  %135 = vmatpush.msra.mxu0 0.0
  %136 = vmatpush.msra.mxu0 0.0
  %137 = vmatpush.msra.mxu0 0.0
  %138 = vmatpush.msra.mxu0 0.0
  %139 = vmatpush.msra.mxu0 0.0
  %140 = vmatpush.msra.mxu0 %v124
  %141 = vmatpush.msra.mxu0 %v104
  %142 = vmatmul.f32.gmra.mxu0 %v117
  %v143 = vpop.f32.mrf.mxu0
  %v144 = vadd.f32 0.0, %v143
  %145 = vmatmul.f32.gmra.mxu0 %v120
  %v146 = vpop.f32.mrf.mxu0
  %v147 = vadd.f32 0.0, %v146
  %148 = vdwg.mxu0
  %vm149 = vcmask 97280
  %v151 = vsel %vm149, %v111, 0
  %v154 = vsel %vm149, %v112, 0
  %v157 = vsel %vm82, %v67, 0
  %159 = vmatpush.msra.mxu0 0.0
  %160 = vmatpush.msra.mxu0 0.0
  %161 = vmatpush.msra.mxu0 0.0
  %162 = vmatpush.msra.mxu0 0.0
  %163 = vmatpush.msra.mxu0 0.0
  %164 = vmatpush.msra.mxu0 0.0
  %165 = vmatpush.msra.mxu0 0.0
  %166 = vmatpush.msra.mxu0 0.0
  %167 = vmatpush.msra.mxu0 0.0
  %168 = vmatpush.msra.mxu0 0.0
  %169 = vmatpush.msra.mxu0 0.0
  %170 = vmatpush.msra.mxu0 0.0
  %171 = vmatpush.msra.mxu0 0.0
  %172 = vmatpush.msra.mxu0 0.0
  %173 = vmatpush.msra.mxu0 %v157
  %174 = vmatpush.msra.mxu0 %v64
  %175 = vmatmul.f32.gmra.mxu0 %v151
  %v176 = vpop.f32.mrf.mxu0
  %v177 = vadd.f32 0.0, %v176
  %178 = vmatmul.f32.gmra.mxu0 %v154
  %v179 = vpop.f32.mrf.mxu0
  %v180 = vadd.f32 0.0, %v179
  %181 = vdwg.mxu0
  %184 = vrot.lane.b32.xlu0 %v177, 32
  %v185 = vpop.permute.xlu0 %184
  %186 = vrot.lane.b32.xlu0 %v180, 32
  %v187 = vpop.permute.xlu0 %186
  %vm190 = vcmask 261120
  %v191 = vsel %vm190, %v144, %v185
  %v192 = vsel %vm190, %v147, %v187
  %v193 = vld [vmem:[%s6 + $0x30] sm:$0xff]
  %v194 = vld [vmem:[%s6 + $0x38] sm:$0xff]
  %v195 = vld [vmem:[%s6 + $0x40] sm:$0xff]
  %v196 = vld [vmem:[%s6 + $0x48] sm:$0xff]
  %v197 = vld [vmem:[%s6 + $0x50] sm:$0xff]
  %v198 = vld [vmem:[%s6 + $0x58] sm:$0xff]
  %v199 = vld [vmem:[%s6 + $0x60] sm:$0xff]
  %v200 = vld [vmem:[%s6 + $0x68] sm:$0xff]
  %v201 = vperm.slane %v32, 2
  %vm202 = vcmask 523264
  %v204 = vsel %vm202, %v191, 0
  %v207 = vsel %vm202, %v192, 0
  %209 = vmatpush.msra.mxu0 0.0
  %210 = vmatpush.msra.mxu0 0.0
  %211 = vmatpush.msra.mxu0 0.0
  %212 = vmatpush.msra.mxu0 0.0
  %213 = vmatpush.msra.mxu0 0.0
  %214 = vmatpush.msra.mxu0 0.0
  %215 = vmatpush.msra.mxu0 0.0
  %216 = vmatpush.msra.mxu0 0.0
  %217 = vmatpush.msra.mxu0 %v200
  %218 = vmatpush.msra.mxu0 %v199
  %219 = vmatpush.msra.mxu0 %v198
  %220 = vmatpush.msra.mxu0 %v197
  %221 = vmatpush.msra.mxu0 %v196
  %222 = vmatpush.msra.mxu0 %v195
  %223 = vmatpush.msra.mxu0 %v194
  %224 = vmatpush.msra.mxu0 %v193
  %225 = vmatmul.f32.gmra.mxu0 %v204
  %v226 = vpop.f32.mrf.mxu0
  %v227 = vadd.f32 %v201, %v226
  %228 = vmatmul.f32.gmra.mxu0 %v207
  %v229 = vpop.f32.mrf.mxu0
  %v230 = vadd.f32 %v201, %v229
  %231 = vdwg.mxu0
  %v233 = vsel %vm149, %v113, 0
  %v236 = vsel %vm149, %v114, 0
  %238 = vmatpush.msra.mxu0 0.0
  %239 = vmatpush.msra.mxu0 0.0
  %240 = vmatpush.msra.mxu0 0.0
  %241 = vmatpush.msra.mxu0 0.0
  %242 = vmatpush.msra.mxu0 0.0
  %243 = vmatpush.msra.mxu0 0.0
  %244 = vmatpush.msra.mxu0 0.0
  %245 = vmatpush.msra.mxu0 0.0
  %246 = vmatpush.msra.mxu0 0.0
  %247 = vmatpush.msra.mxu0 0.0
  %248 = vmatpush.msra.mxu0 0.0
  %249 = vmatpush.msra.mxu0 0.0
  %250 = vmatpush.msra.mxu0 0.0
  %251 = vmatpush.msra.mxu0 0.0
  %252 = vmatpush.msra.mxu0 %v157
  %253 = vmatpush.msra.mxu0 %v64
  %254 = vmatmul.f32.gmra.mxu0 %v233
  %v255 = vpop.f32.mrf.mxu0
  %v256 = vadd.f32 0.0, %v255
  %257 = vmatmul.f32.gmra.mxu0 %v236
  %v258 = vpop.f32.mrf.mxu0
  %v259 = vadd.f32 0.0, %v258
  %260 = vdwg.mxu0
  %v261 = vld [vmem:[%s6 + $0xb0] sm:$0xff]
  %v262 = vld [vmem:[%s6 + $0xb8] sm:$0xff]
  %v263 = vld [vmem:[%s6 + $0xc0] sm:$0xff]
  %v264 = vld [vmem:[%s6 + $0xc8] sm:$0xff]
  %v265 = vperm.slane %v32, 4
  %v267 = vsel %vm190, %v256, 0
  %v270 = vsel %vm190, %v259, 0
  %272 = vmatpush.msra.mxu0 0.0
  %273 = vmatpush.msra.mxu0 0.0
  %274 = vmatpush.msra.mxu0 0.0
  %275 = vmatpush.msra.mxu0 0.0
  %276 = vmatpush.msra.mxu0 0.0
  %277 = vmatpush.msra.mxu0 0.0
  %278 = vmatpush.msra.mxu0 0.0
  %279 = vmatpush.msra.mxu0 0.0
  %280 = vmatpush.msra.mxu0 0.0
  %281 = vmatpush.msra.mxu0 0.0
  %282 = vmatpush.msra.mxu0 0.0
  %283 = vmatpush.msra.mxu0 0.0
  %284 = vmatpush.msra.mxu0 %v264
  %285 = vmatpush.msra.mxu0 %v263
  %286 = vmatpush.msra.mxu0 %v262
  %287 = vmatpush.msra.mxu0 %v261
  %288 = vmatmul.f32.gmra.mxu0 %v267
  %v289 = vpop.f32.mrf.mxu0
  %v290 = vadd.f32 %v265, %v289
  %291 = vmatmul.f32.gmra.mxu0 %v270
  %v292 = vpop.f32.mrf.mxu0
  %v293 = vadd.f32 %v265, %v292
  %294 = vdwg.mxu0
  %vm295 = vcmp.gt.f32.partialorder %v227, 0.0
  %vm296 = vcmp.gt.f32.partialorder %v230, 0.0
  %v298 = vrot.slane %v32, 7
  %s299 = vtos %v298
  %v300 = vstv %s299
  %v302 = vmul.f32 %v300, %v227
  %v303 = vmul.f32 %v300, %v230
  %v304 = vsel %vm295, %v227, %v302
  %v305 = vsel %vm296, %v230, %v303
  %vm306 = vcmp.gt.f32.partialorder %v290, 0.0
  %vm307 = vcmp.gt.f32.partialorder %v293, 0.0
  %v308 = vmul.f32 %v300, %v290
  %v309 = vmul.f32 %v300, %v293
  %v310 = vsel %vm306, %v290, %v308
  %v311 = vsel %vm307, %v293, %v309
  %v313 = vsel %vm122, %v305, 0
  %315 = vmatpush.msra.mxu0 0.0
  %316 = vmatpush.msra.mxu0 0.0
  %317 = vmatpush.msra.mxu0 0.0
  %318 = vmatpush.msra.mxu0 0.0
  %319 = vmatpush.msra.mxu0 0.0
  %320 = vmatpush.msra.mxu0 0.0
  %321 = vmatpush.msra.mxu0 0.0
  %322 = vmatpush.msra.mxu0 0.0
  %323 = vmatpush.msra.mxu0 0.0
  %324 = vmatpush.msra.mxu0 0.0
  %325 = vmatpush.msra.mxu0 0.0
  %326 = vmatpush.msra.mxu0 0.0
  %327 = vmatpush.msra.mxu0 0.0
  %328 = vmatpush.msra.mxu0 0.0
  %329 = vmatpush.msra.mxu0 %v313
  %330 = vmatpush.msra.mxu0 %v304
  %331 = vmatmul.f32.gmra.mxu0 %v117
  %v332 = vpop.f32.mrf.mxu0
  %v333 = vadd.f32 0.0, %v332
  %334 = vmatmul.f32.gmra.mxu0 %v120
  %v335 = vpop.f32.mrf.mxu0
  %v336 = vadd.f32 0.0, %v335
  %337 = vdwg.mxu0
  %v339 = vsel %vm82, %v311, 0
  %341 = vmatpush.msra.mxu0 0.0
  %342 = vmatpush.msra.mxu0 0.0
  %343 = vmatpush.msra.mxu0 0.0
  %344 = vmatpush.msra.mxu0 0.0
  %345 = vmatpush.msra.mxu0 0.0
  %346 = vmatpush.msra.mxu0 0.0
  %347 = vmatpush.msra.mxu0 0.0
  %348 = vmatpush.msra.mxu0 0.0
  %349 = vmatpush.msra.mxu0 0.0
  %350 = vmatpush.msra.mxu0 0.0
  %351 = vmatpush.msra.mxu0 0.0
  %352 = vmatpush.msra.mxu0 0.0
  %353 = vmatpush.msra.mxu0 0.0
  %354 = vmatpush.msra.mxu0 0.0
  %355 = vmatpush.msra.mxu0 %v339
  %356 = vmatpush.msra.mxu0 %v310
  %357 = vmatmul.f32.gmra.mxu0 %v151
  %v358 = vpop.f32.mrf.mxu0
  %v359 = vadd.f32 0.0, %v358
  %360 = vmatmul.f32.gmra.mxu0 %v154
  %v361 = vpop.f32.mrf.mxu0
  %v362 = vadd.f32 0.0, %v361
  %363 = vdwg.mxu0
  %366 = vrot.lane.b32.xlu0 %v359, 32
  %v367 = vpop.permute.xlu0 %366
  %368 = vrot.lane.b32.xlu0 %v362, 32
  %v369 = vpop.permute.xlu0 %368
  %v372 = vsel %vm190, %v333, %v367
  %v373 = vsel %vm190, %v336, %v369
  %v374 = vld [vmem:[%s6 + $0x70] sm:$0xff]
  %v375 = vld [vmem:[%s6 + $0x78] sm:$0xff]
  %v376 = vld [vmem:[%s6 + $0x80] sm:$0xff]
  %v377 = vld [vmem:[%s6 + $0x88] sm:$0xff]
  %v378 = vld [vmem:[%s6 + $0x90] sm:$0xff]
  %v379 = vld [vmem:[%s6 + $0x98] sm:$0xff]
  %v380 = vld [vmem:[%s6 + $0xa0] sm:$0xff]
  %v381 = vld [vmem:[%s6 + $0xa8] sm:$0xff]
  %v382 = vperm.slane %v32, 3
  %v384 = vsel %vm202, %v372, 0
  %v387 = vsel %vm202, %v373, 0
  %389 = vmatpush.msra.mxu0 0.0
  %390 = vmatpush.msra.mxu0 0.0
  %391 = vmatpush.msra.mxu0 0.0
  %392 = vmatpush.msra.mxu0 0.0
  %393 = vmatpush.msra.mxu0 0.0
  %394 = vmatpush.msra.mxu0 0.0
  %395 = vmatpush.msra.mxu0 0.0
  %396 = vmatpush.msra.mxu0 0.0
  %397 = vmatpush.msra.mxu0 %v381
  %398 = vmatpush.msra.mxu0 %v380
  %399 = vmatpush.msra.mxu0 %v379
  %400 = vmatpush.msra.mxu0 %v378
  %401 = vmatpush.msra.mxu0 %v377
  %402 = vmatpush.msra.mxu0 %v376
  %403 = vmatpush.msra.mxu0 %v375
  %404 = vmatpush.msra.mxu0 %v374
  %405 = vmatmul.f32.gmra.mxu0 %v384
  %v406 = vpop.f32.mrf.mxu0
  %v407 = vadd.f32 %v382, %v406
  %408 = vmatmul.f32.gmra.mxu0 %v387
  %v409 = vpop.f32.mrf.mxu0
  %v410 = vadd.f32 %v382, %v409
  %411 = vdwg.mxu0
  %412 = vmatpush.msra.mxu0 0.0
  %413 = vmatpush.msra.mxu0 0.0
  %414 = vmatpush.msra.mxu0 0.0
  %415 = vmatpush.msra.mxu0 0.0
  %416 = vmatpush.msra.mxu0 0.0
  %417 = vmatpush.msra.mxu0 0.0
  %418 = vmatpush.msra.mxu0 0.0
  %419 = vmatpush.msra.mxu0 0.0
  %420 = vmatpush.msra.mxu0 0.0
  %421 = vmatpush.msra.mxu0 0.0
  %422 = vmatpush.msra.mxu0 0.0
  %423 = vmatpush.msra.mxu0 0.0
  %424 = vmatpush.msra.mxu0 0.0
  %425 = vmatpush.msra.mxu0 0.0
  %426 = vmatpush.msra.mxu0 %v339
  %427 = vmatpush.msra.mxu0 %v310
  %428 = vmatmul.f32.gmra.mxu0 %v233
  %v429 = vpop.f32.mrf.mxu0
  %v430 = vadd.f32 0.0, %v429
  %431 = vmatmul.f32.gmra.mxu0 %v236
  %v432 = vpop.f32.mrf.mxu0
  %v433 = vadd.f32 0.0, %v432
  %434 = vdwg.mxu0
  %v435 = vld [vmem:[%s6 + $0xd0] sm:$0xff]
  %v436 = vld [vmem:[%s6 + $0xd8] sm:$0xff]
  %v437 = vld [vmem:[%s6 + $0xe0] sm:$0xff]
  %v438 = vld [vmem:[%s6 + $0xe8] sm:$0xff]
  %v439 = vperm.slane %v32, 5
  %v441 = vsel %vm190, %v430, 0
  %v444 = vsel %vm190, %v433, 0
  %446 = vmatpush.msra.mxu0 0.0
  %447 = vmatpush.msra.mxu0 0.0
  %448 = vmatpush.msra.mxu0 0.0
  %449 = vmatpush.msra.mxu0 0.0
  %450 = vmatpush.msra.mxu0 0.0
  %451 = vmatpush.msra.mxu0 0.0
  %452 = vmatpush.msra.mxu0 0.0
  %453 = vmatpush.msra.mxu0 0.0
  %454 = vmatpush.msra.mxu0 0.0
  %455 = vmatpush.msra.mxu0 0.0
  %456 = vmatpush.msra.mxu0 0.0
  %457 = vmatpush.msra.mxu0 0.0
  %458 = vmatpush.msra.mxu0 %v438
  %459 = vmatpush.msra.mxu0 %v437
  %460 = vmatpush.msra.mxu0 %v436
  %461 = vmatpush.msra.mxu0 %v435
  %462 = vmatmul.f32.gmra.mxu0 %v441
  %v463 = vpop.f32.mrf.mxu0
  %v464 = vadd.f32 %v439, %v463
  %465 = vmatmul.f32.gmra.mxu0 %v444
  %v466 = vpop.f32.mrf.mxu0
  %v467 = vadd.f32 %v439, %v466
  %468 = vdwg.mxu0
  %vm469 = vcmp.gt.f32.partialorder %v407, 0.0
  %vm470 = vcmp.gt.f32.partialorder %v410, 0.0
  %471 = vrot.lane.b32.xlu0 %v298, 127
  %v472 = vpop.permute.xlu0 %471
  %s473 = vtos %v472
  %v474 = vstv %s473
  %v476 = vmul.f32 %v474, %v407
  %v477 = vmul.f32 %v474, %v410
  %v478 = vsel %vm469, %v407, %v476
  %v479 = vsel %vm470, %v410, %v477
  %vm480 = vcmp.gt.f32.partialorder %v464, 0.0
  %vm481 = vcmp.gt.f32.partialorder %v467, 0.0
  %v482 = vmul.f32 %v474, %v464
  %v483 = vmul.f32 %v474, %v467
  %v484 = vsel %vm480, %v464, %v482
  %v485 = vsel %vm481, %v467, %v483
  %487 = vrot.lane.b32.xlu0 %v310, 32
  %v488 = vpop.permute.xlu0 %487
  %489 = vrot.lane.b32.xlu0 %v311, 32
  %v490 = vpop.permute.xlu0 %489
  %495 = vrot.lane.b32.xlu0 %v484, 64
  %v496 = vpop.permute.xlu0 %495
  %497 = vrot.lane.b32.xlu0 %v485, 64
  %v498 = vpop.permute.xlu0 %497
  %v501 = vsel %vm190, %v64, %v488
  %v502 = vsel %vm190, %v67, %v490
  %v503 = vsel %vm202, %v501, %v496
  %v504 = vsel %vm202, %v502, %v498
  %v505 = vld [vmem:[%s6 + $0xf0] sm:$0xff]
  %v506 = vld [vmem:[%s6 + $0xf8] sm:$0xff]
  %v507 = vld [vmem:[%s6 + $0x100] sm:$0xff]
  %v508 = vld [vmem:[%s6 + $0x108] sm:$0xff]
  %v509 = vld [vmem:[%s6 + $0x110] sm:$0xff]
  %v510 = vld [vmem:[%s6 + $0x118] sm:$0xff]
  %v511 = vld [vmem:[%s6 + $0x120] sm:$0xff]
  %v512 = vld [vmem:[%s6 + $0x128] sm:$0xff]
  %v513 = vld [vmem:[%s6 + $0x130] sm:$0xff]
  %v514 = vld [vmem:[%s6 + $0x138] sm:$0xff]
  %v515 = vld [vmem:[%s6 + $0x140] sm:$0xff]
  %v516 = vld [vmem:[%s6 + $0x148] sm:$0xff]
  %vm517 = vcmask 785408
  %v519 = vsel %vm517, %v503, 0
  %v522 = vsel %vm517, %v504, 0
  %524 = vmatpush.msra.mxu0 0.0
  %525 = vmatpush.msra.mxu0 0.0
  %526 = vmatpush.msra.mxu0 0.0
  %527 = vmatpush.msra.mxu0 0.0
  %528 = vmatpush.msra.mxu0 %v516
  %529 = vmatpush.msra.mxu0 %v515
  %530 = vmatpush.msra.mxu0 %v514
  %531 = vmatpush.msra.mxu0 %v513
  %532 = vmatpush.msra.mxu0 %v512
  %533 = vmatpush.msra.mxu0 %v511
  %534 = vmatpush.msra.mxu0 %v510
  %535 = vmatpush.msra.mxu0 %v509
  %536 = vmatpush.msra.mxu0 %v508
  %537 = vmatpush.msra.mxu0 %v507
  %538 = vmatpush.msra.mxu0 %v506
  %539 = vmatpush.msra.mxu0 %v505
  %540 = vmatmul.f32.gmra.mxu0 %v519
  %v541 = vpop.f32.mrf.mxu0
  %v542 = vadd.f32 0.0, %v541
  %543 = vmatmul.f32.gmra.mxu0 %v522
  %v544 = vpop.f32.mrf.mxu0
  %v545 = vadd.f32 0.0, %v544
  %546 = vdwg.mxu0
  %548 = vrot.lane.b32.xlu0 %v304, 32
  %v549 = vpop.permute.xlu0 %548
  %550 = vrot.lane.b32.xlu0 %v305, 32
  %v551 = vpop.permute.xlu0 %550
  %556 = vrot.lane.b32.xlu0 %v478, 64
  %v557 = vpop.permute.xlu0 %556
  %558 = vrot.lane.b32.xlu0 %v479, 64
  %v559 = vpop.permute.xlu0 %558
  %v562 = vsel %vm190, %v104, %v549
  %v563 = vsel %vm190, %v107, %v551
  %v564 = vsel %vm202, %v562, %v557
  %v565 = vsel %vm202, %v563, %v559
  %v566 = vld [vmem:[%s6 + $0x150] sm:$0xff]
  %v567 = vld [vmem:[%s6 + $0x158] sm:$0xff]
  %v568 = vld [vmem:[%s6 + $0x160] sm:$0xff]
  %v569 = vld [vmem:[%s6 + $0x168] sm:$0xff]
  %v570 = vld [vmem:[%s6 + $0x170] sm:$0xff]
  %v571 = vld [vmem:[%s6 + $0x178] sm:$0xff]
  %v572 = vld [vmem:[%s6 + $0x180] sm:$0xff]
  %v573 = vld [vmem:[%s6 + $0x188] sm:$0xff]
  %v574 = vld [vmem:[%s6 + $0x190] sm:$0xff]
  %v575 = vld [vmem:[%s6 + $0x198] sm:$0xff]
  %v576 = vld [vmem:[%s6 + $0x1a0] sm:$0xff]
  %v577 = vld [vmem:[%s6 + $0x1a8] sm:$0xff]
  %v579 = vsel %vm517, %v564, 0
  %v582 = vsel %vm517, %v565, 0
  %584 = vmatpush.msra.mxu0 0.0
  %585 = vmatpush.msra.mxu0 0.0
  %586 = vmatpush.msra.mxu0 0.0
  %587 = vmatpush.msra.mxu0 0.0
  %588 = vmatpush.msra.mxu0 %v577
  %589 = vmatpush.msra.mxu0 %v576
  %590 = vmatpush.msra.mxu0 %v575
  %591 = vmatpush.msra.mxu0 %v574
  %592 = vmatpush.msra.mxu0 %v573
  %593 = vmatpush.msra.mxu0 %v572
  %594 = vmatpush.msra.mxu0 %v571
  %595 = vmatpush.msra.mxu0 %v570
  %596 = vmatpush.msra.mxu0 %v569
  %597 = vmatpush.msra.mxu0 %v568
  %598 = vmatpush.msra.mxu0 %v567
  %599 = vmatpush.msra.mxu0 %v566
  %600 = vmatmul.f32.gmra.mxu0 %v579
  %v601 = vpop.f32.mrf.mxu0
  %v602 = vadd.f32 0.0, %v601
  %603 = vmatmul.f32.gmra.mxu0 %v582
  %v604 = vpop.f32.mrf.mxu0
  %v605 = vadd.f32 0.0, %v604
  %606 = vdwg.mxu0
  %v607 = vld [vmem:[%s5] sm:$0xff]
  %v608 = vld [vmem:[%s5 + $0x8] sm:$0xff]
  %v609 = vld [vmem:[%s5 + $0x10] sm:$0xff]
  %v610 = vld [vmem:[%s5 + $0x18] sm:$0xff]
  %v611 = vld [vmem:[%s5 + $0x20] sm:$0xff]
  %v612 = vld [vmem:[%s5 + $0x28] sm:$0xff]
  %v613 = vld [vmem:[%s5 + $0x30] sm:$0xff]
  %v614 = vld [vmem:[%s5 + $0x38] sm:$0xff]
  %v615 = vlaneseq
  %v616 = vand.u32 %v615, 127
  %617 = vset.pattern.permute.xlu0 0
  %618 = vperm.xlu0 %617, %v607
  %v619 = vpop.permute.xlu0 %618
  %620 = vset.pattern.permute.xlu0 0
  %621 = vperm.xlu0 %620, %v608
  %v622 = vpop.permute.xlu0 %621
  %623 = vset.pattern.permute.xlu0 0
  %624 = vperm.xlu0 %623, %v609
  %v625 = vpop.permute.xlu0 %624
  %626 = vset.pattern.permute.xlu0 0
  %627 = vperm.xlu0 %626, %v610
  %v628 = vpop.permute.xlu0 %627
  %629 = vset.pattern.permute.xlu0 0
  %630 = vperm.xlu0 %629, %v611
  %v631 = vpop.permute.xlu0 %630
  %632 = vset.pattern.permute.xlu0 0
  %633 = vperm.xlu0 %632, %v612
  %v634 = vpop.permute.xlu0 %633
  %635 = vset.pattern.permute.xlu0 0
  %636 = vperm.xlu0 %635, %v613
  %v637 = vpop.permute.xlu0 %636
  %638 = vset.pattern.permute.xlu0 0
  %639 = vperm.xlu0 %638, %v614
  %v640 = vpop.permute.xlu0 %639
  %vm641 = vcmp.eq.s32.totalorder %v619, %v616
  %vm642 = vcmp.eq.s32.totalorder %v622, %v616
  %vm643 = vcmp.eq.s32.totalorder %v625, %v616
  %vm644 = vcmp.eq.s32.totalorder %v628, %v616
  %vm645 = vcmp.eq.s32.totalorder %v631, %v616
  %vm646 = vcmp.eq.s32.totalorder %v634, %v616
  %vm647 = vcmp.eq.s32.totalorder %v637, %v616
  %vm648 = vcmp.eq.s32.totalorder %v640, %v616
  %v649 = vsel %vm641, 1.0, 0.0
  %v650 = vsel %vm642, 1.0, 0.0
  %v651 = vsel %vm643, 1.0, 0.0
  %v652 = vsel %vm644, 1.0, 0.0
  %v653 = vsel %vm645, 1.0, 0.0
  %v654 = vsel %vm646, 1.0, 0.0
  %v655 = vsel %vm647, 1.0, 0.0
  %v656 = vsel %vm648, 1.0, 0.0
  %v658 = vsel %vm149, %v649, 0
  %v661 = vsel %vm149, %v650, 0
  %v664 = vsel %vm149, %v651, 0
  %v667 = vsel %vm149, %v652, 0
  %v670 = vsel %vm149, %v653, 0
  %v673 = vsel %vm149, %v654, 0
  %v676 = vsel %vm149, %v655, 0
  %v679 = vsel %vm149, %v656, 0
  %v682 = vsel %vm82, %v545, 0
  %684 = vmatpush.msra.mxu0 0.0
  %685 = vmatpush.msra.mxu0 0.0
  %686 = vmatpush.msra.mxu0 0.0
  %687 = vmatpush.msra.mxu0 0.0
  %688 = vmatpush.msra.mxu0 0.0
  %689 = vmatpush.msra.mxu0 0.0
  %690 = vmatpush.msra.mxu0 0.0
  %691 = vmatpush.msra.mxu0 0.0
  %692 = vmatpush.msra.mxu0 0.0
  %693 = vmatpush.msra.mxu0 0.0
  %694 = vmatpush.msra.mxu0 0.0
  %695 = vmatpush.msra.mxu0 0.0
  %696 = vmatpush.msra.mxu0 0.0
  %697 = vmatpush.msra.mxu0 0.0
  %698 = vmatpush.msra.mxu0 %v682
  %699 = vmatpush.msra.mxu0 %v542
  %700 = vmatmul.f32.gmra.mxu0 %v658
  %v701 = vpop.f32.mrf.mxu0
  %v702 = vadd.f32 0.0, %v701
  %703 = vmatmul.f32.gmra.mxu0 %v661
  %v704 = vpop.f32.mrf.mxu0
  %v705 = vadd.f32 0.0, %v704
  %706 = vmatmul.f32.gmra.mxu0 %v664
  %v707 = vpop.f32.mrf.mxu0
  %v708 = vadd.f32 0.0, %v707
  %709 = vmatmul.f32.gmra.mxu0 %v667
  %v710 = vpop.f32.mrf.mxu0
  %v711 = vadd.f32 0.0, %v710
  %712 = vmatmul.f32.gmra.mxu0 %v670
  %v713 = vpop.f32.mrf.mxu0
  %v714 = vadd.f32 0.0, %v713
  %715 = vmatmul.f32.gmra.mxu0 %v673
  %v716 = vpop.f32.mrf.mxu0
  %v717 = vadd.f32 0.0, %v716
  %718 = vmatmul.f32.gmra.mxu0 %v676
  %v719 = vpop.f32.mrf.mxu0
  %v720 = vadd.f32 0.0, %v719
  %721 = vmatmul.f32.gmra.mxu0 %v679
  %v722 = vpop.f32.mrf.mxu0
  %v723 = vadd.f32 0.0, %v722
  %724 = vdwg.mxu0
  %725 = vset.pattern.permute.xlu0 1
  %726 = vperm.xlu0 %725, %v607
  %v727 = vpop.permute.xlu0 %726
  %728 = vset.pattern.permute.xlu0 1
  %729 = vperm.xlu0 %728, %v608
  %v730 = vpop.permute.xlu0 %729
  %731 = vset.pattern.permute.xlu0 1
  %732 = vperm.xlu0 %731, %v609
  %v733 = vpop.permute.xlu0 %732
  %734 = vset.pattern.permute.xlu0 1
  %735 = vperm.xlu0 %734, %v610
  %v736 = vpop.permute.xlu0 %735
  %737 = vset.pattern.permute.xlu0 1
  %738 = vperm.xlu0 %737, %v611
  %v739 = vpop.permute.xlu0 %738
  %740 = vset.pattern.permute.xlu0 1
  %741 = vperm.xlu0 %740, %v612
  %v742 = vpop.permute.xlu0 %741
  %743 = vset.pattern.permute.xlu0 1
  %744 = vperm.xlu0 %743, %v613
  %v745 = vpop.permute.xlu0 %744
  %746 = vset.pattern.permute.xlu0 1
  %747 = vperm.xlu0 %746, %v614
  %v748 = vpop.permute.xlu0 %747
  %vm749 = vcmp.eq.s32.totalorder %v727, %v616
  %vm750 = vcmp.eq.s32.totalorder %v730, %v616
  %vm751 = vcmp.eq.s32.totalorder %v733, %v616
  %vm752 = vcmp.eq.s32.totalorder %v736, %v616
  %vm753 = vcmp.eq.s32.totalorder %v739, %v616
  %vm754 = vcmp.eq.s32.totalorder %v742, %v616
  %vm755 = vcmp.eq.s32.totalorder %v745, %v616
  %vm756 = vcmp.eq.s32.totalorder %v748, %v616
  %v757 = vsel %vm749, 1.0, 0.0
  %v758 = vsel %vm750, 1.0, 0.0
  %v759 = vsel %vm751, 1.0, 0.0
  %v760 = vsel %vm752, 1.0, 0.0
  %v761 = vsel %vm753, 1.0, 0.0
  %v762 = vsel %vm754, 1.0, 0.0
  %v763 = vsel %vm755, 1.0, 0.0
  %v764 = vsel %vm756, 1.0, 0.0
  %v766 = vsel %vm115, %v757, 0
  %v769 = vsel %vm115, %v758, 0
  %v772 = vsel %vm115, %v759, 0
  %v775 = vsel %vm115, %v760, 0
  %v778 = vsel %vm115, %v761, 0
  %v781 = vsel %vm115, %v762, 0
  %v784 = vsel %vm115, %v763, 0
  %v787 = vsel %vm115, %v764, 0
  %v790 = vsel %vm122, %v605, 0
  %792 = vmatpush.msra.mxu0 0.0
  %793 = vmatpush.msra.mxu0 0.0
  %794 = vmatpush.msra.mxu0 0.0
  %795 = vmatpush.msra.mxu0 0.0
  %796 = vmatpush.msra.mxu0 0.0
  %797 = vmatpush.msra.mxu0 0.0
  %798 = vmatpush.msra.mxu0 0.0
  %799 = vmatpush.msra.mxu0 0.0
  %800 = vmatpush.msra.mxu0 0.0
  %801 = vmatpush.msra.mxu0 0.0
  %802 = vmatpush.msra.mxu0 0.0
  %803 = vmatpush.msra.mxu0 0.0
  %804 = vmatpush.msra.mxu0 0.0
  %805 = vmatpush.msra.mxu0 0.0
  %806 = vmatpush.msra.mxu0 %v790
  %807 = vmatpush.msra.mxu0 %v602
  %808 = vmatmul.f32.gmra.mxu0 %v766
  %v809 = vpop.f32.mrf.mxu0
  %v810 = vadd.f32 0.0, %v809
  %811 = vmatmul.f32.gmra.mxu0 %v769
  %v812 = vpop.f32.mrf.mxu0
  %v813 = vadd.f32 0.0, %v812
  %814 = vmatmul.f32.gmra.mxu0 %v772
  %v815 = vpop.f32.mrf.mxu0
  %v816 = vadd.f32 0.0, %v815
  %817 = vmatmul.f32.gmra.mxu0 %v775
  %v818 = vpop.f32.mrf.mxu0
  %v819 = vadd.f32 0.0, %v818
  %820 = vmatmul.f32.gmra.mxu0 %v778
  %v821 = vpop.f32.mrf.mxu0
  %v822 = vadd.f32 0.0, %v821
  %823 = vmatmul.f32.gmra.mxu0 %v781
  %v824 = vpop.f32.mrf.mxu0
  %v825 = vadd.f32 0.0, %v824
  %826 = vmatmul.f32.gmra.mxu0 %v784
  %v827 = vpop.f32.mrf.mxu0
  %v828 = vadd.f32 0.0, %v827
  %829 = vmatmul.f32.gmra.mxu0 %v787
  %v830 = vpop.f32.mrf.mxu0
  %v831 = vadd.f32 0.0, %v830
  %832 = vdwg.mxu0
  %v833 = vadd.f32 %v702, %v714
  %v834 = vadd.f32 %v705, %v717
  %v835 = vadd.f32 %v708, %v720
  %v836 = vadd.f32 %v711, %v723
  %v837 = vmul.f32 %v833, 0.5
  %v838 = vmul.f32 %v834, 0.5
  %v839 = vmul.f32 %v835, 0.5
  %v840 = vmul.f32 %v836, 0.5
  %v841 = vadd.f32 %v822, %v810
  %v842 = vadd.f32 %v825, %v813
  %v843 = vadd.f32 %v828, %v816
  %v844 = vadd.f32 %v831, %v819
  %v845 = vmul.f32 %v841, 0.5
  %v846 = vmul.f32 %v842, 0.5
  %v847 = vmul.f32 %v843, 0.5
  %v848 = vmul.f32 %v844, 0.5
  %853 = vrot.lane.b32.xlu0 %v845, 32
  %v854 = vpop.permute.xlu0 %853
  %855 = vrot.lane.b32.xlu0 %v846, 32
  %v856 = vpop.permute.xlu0 %855
  %857 = vrot.lane.b32.xlu0 %v847, 32
  %v858 = vpop.permute.xlu0 %857
  %859 = vrot.lane.b32.xlu0 %v848, 32
  %v860 = vpop.permute.xlu0 %859
  %v865 = vsel %vm190, %v837, %v854
  %v866 = vsel %vm190, %v838, %v856
  %v867 = vsel %vm190, %v839, %v858
  %v868 = vsel %vm190, %v840, %v860
  %v869 = vld [vmem:[%s7] sm:$0xff]
  %v870 = vld [vmem:[%s7 + $0x8] sm:$0xff]
  %v871 = vld [vmem:[%s7 + $0x10] sm:$0xff]
  %v872 = vld [vmem:[%s7 + $0x18] sm:$0xff]
  %v873 = vld [vmem:[%s7 + $0x20] sm:$0xff]
  %v874 = vld [vmem:[%s7 + $0x28] sm:$0xff]
  %v875 = vld [vmem:[%s7 + $0x30] sm:$0xff]
  %v876 = vld [vmem:[%s7 + $0x38] sm:$0xff]
  %v878 = vsel %vm202, %v865, 0
  %v881 = vsel %vm202, %v866, 0
  %v884 = vsel %vm202, %v867, 0
  %v887 = vsel %vm202, %v868, 0
  %889 = vmatpush.msra.mxu0 0.0
  %890 = vmatpush.msra.mxu0 0.0
  %891 = vmatpush.msra.mxu0 0.0
  %892 = vmatpush.msra.mxu0 0.0
  %893 = vmatpush.msra.mxu0 0.0
  %894 = vmatpush.msra.mxu0 0.0
  %895 = vmatpush.msra.mxu0 0.0
  %896 = vmatpush.msra.mxu0 0.0
  %897 = vmatpush.msra.mxu0 %v876
  %898 = vmatpush.msra.mxu0 %v875
  %899 = vmatpush.msra.mxu0 %v874
  %900 = vmatpush.msra.mxu0 %v873
  %901 = vmatpush.msra.mxu0 %v872
  %902 = vmatpush.msra.mxu0 %v871
  %903 = vmatpush.msra.mxu0 %v870
  %904 = vmatpush.msra.mxu0 %v869
  %905 = vmatmul.f32.gmra.mxu0 %v878
  %v906 = vpop.f32.mrf.mxu0
  %v907 = vadd.f32 0.0, %v906
  %908 = vmatmul.f32.gmra.mxu0 %v881
  %v909 = vpop.f32.mrf.mxu0
  %v910 = vadd.f32 0.0, %v909
  %911 = vmatmul.f32.gmra.mxu0 %v884
  %v912 = vpop.f32.mrf.mxu0
  %v913 = vadd.f32 0.0, %v912
  %914 = vmatmul.f32.gmra.mxu0 %v887
  %v915 = vpop.f32.mrf.mxu0
  %v916 = vadd.f32 0.0, %v915
  %917 = vdwg.mxu0
  %v918 = vadd.f32 %v907, %v810
  %v919 = vadd.f32 %v910, %v813
  %v920 = vadd.f32 %v913, %v816
  %v921 = vadd.f32 %v916, %v819
  %v922 = vmul.f32 %v918, 0.5
  %v923 = vmul.f32 %v919, 0.5
  %v924 = vmul.f32 %v920, 0.5
  %v925 = vmul.f32 %v921, 0.5
  %v926 = vadd.f32 %v922, %v822
  %v927 = vadd.f32 %v923, %v825
  %v928 = vadd.f32 %v924, %v828
  %v929 = vadd.f32 %v925, %v831
  %v930 = vmul.f32 %v926, 0.5
  %v931 = vmul.f32 %v927, 0.5
  %v932 = vmul.f32 %v928, 0.5
  %v933 = vmul.f32 %v929, 0.5
  %938 = vrot.lane.b32.xlu0 %v714, 32
  %v939 = vpop.permute.xlu0 %938
  %940 = vrot.lane.b32.xlu0 %v717, 32
  %v941 = vpop.permute.xlu0 %940
  %942 = vrot.lane.b32.xlu0 %v720, 32
  %v943 = vpop.permute.xlu0 %942
  %944 = vrot.lane.b32.xlu0 %v723, 32
  %v945 = vpop.permute.xlu0 %944
  %v950 = vadd.f32 %v907, %v939
  %v951 = vadd.f32 %v910, %v941
  %v952 = vadd.f32 %v913, %v943
  %v953 = vadd.f32 %v916, %v945
  %v954 = vmul.f32 %v950, 0.5
  %v955 = vmul.f32 %v951, 0.5
  %v956 = vmul.f32 %v952, 0.5
  %v957 = vmul.f32 %v953, 0.5
  %962 = vrot.lane.b32.xlu0 %v702, 32
  %v963 = vpop.permute.xlu0 %962
  %964 = vrot.lane.b32.xlu0 %v705, 32
  %v965 = vpop.permute.xlu0 %964
  %966 = vrot.lane.b32.xlu0 %v708, 32
  %v967 = vpop.permute.xlu0 %966
  %968 = vrot.lane.b32.xlu0 %v711, 32
  %v969 = vpop.permute.xlu0 %968
  %v974 = vadd.f32 %v954, %v963
  %v975 = vadd.f32 %v955, %v965
  %v976 = vadd.f32 %v956, %v967
  %v977 = vadd.f32 %v957, %v969
  %v978 = vmul.f32 %v974, 0.5
  %v979 = vmul.f32 %v975, 0.5
  %v980 = vmul.f32 %v976, 0.5
  %v981 = vmul.f32 %v977, 0.5
  %986 = vrot.lane.b32.xlu0 %v978, 96
  %v987 = vpop.permute.xlu0 %986
  %988 = vrot.lane.b32.xlu0 %v979, 96
  %v989 = vpop.permute.xlu0 %988
  %990 = vrot.lane.b32.xlu0 %v980, 96
  %v991 = vpop.permute.xlu0 %990
  %992 = vrot.lane.b32.xlu0 %v981, 96
  %v993 = vpop.permute.xlu0 %992
  %1002 = vrot.lane.b32.xlu0 %v930, 32
  %v1003 = vpop.permute.xlu0 %1002
  %1004 = vrot.lane.b32.xlu0 %v931, 32
  %v1005 = vpop.permute.xlu0 %1004
  %1006 = vrot.lane.b32.xlu0 %v932, 32
  %v1007 = vpop.permute.xlu0 %1006
  %1008 = vrot.lane.b32.xlu0 %v933, 32
  %v1009 = vpop.permute.xlu0 %1008
  %v1014 = vsel %vm190, %v987, %v1003
  %v1015 = vsel %vm190, %v989, %v1005
  %v1016 = vsel %vm190, %v991, %v1007
  %v1017 = vsel %vm190, %v993, %v1009
  %v1018 = vld [vmem:[%s6 + $0x1b0] sm:$0xff]
  %v1019 = vld [vmem:[%s6 + $0x1b8] sm:$0xff]
  %v1020 = vld [vmem:[%s6 + $0x1c0] sm:$0xff]
  %v1021 = vld [vmem:[%s6 + $0x1c8] sm:$0xff]
  %v1022 = vld [vmem:[%s6 + $0x1d0] sm:$0xff]
  %v1023 = vld [vmem:[%s6 + $0x1d8] sm:$0xff]
  %v1024 = vld [vmem:[%s6 + $0x1e0] sm:$0xff]
  %v1025 = vld [vmem:[%s6 + $0x1e8] sm:$0xff]
  %v1027 = vsel %vm202, %v1014, 0
  %v1030 = vsel %vm202, %v1015, 0
  %v1033 = vsel %vm202, %v1016, 0
  %v1036 = vsel %vm202, %v1017, 0
  %1038 = vmatpush.msra.mxu0 0.0
  %1039 = vmatpush.msra.mxu0 0.0
  %1040 = vmatpush.msra.mxu0 0.0
  %1041 = vmatpush.msra.mxu0 0.0
  %1042 = vmatpush.msra.mxu0 0.0
  %1043 = vmatpush.msra.mxu0 0.0
  %1044 = vmatpush.msra.mxu0 0.0
  %1045 = vmatpush.msra.mxu0 0.0
  %1046 = vmatpush.msra.mxu0 %v1025
  %1047 = vmatpush.msra.mxu0 %v1024
  %1048 = vmatpush.msra.mxu0 %v1023
  %1049 = vmatpush.msra.mxu0 %v1022
  %1050 = vmatpush.msra.mxu0 %v1021
  %1051 = vmatpush.msra.mxu0 %v1020
  %1052 = vmatpush.msra.mxu0 %v1019
  %1053 = vmatpush.msra.mxu0 %v1018
  %1054 = vmatmul.f32.gmra.mxu0 %v1027
  %v1055 = vpop.f32.mrf.mxu0
  %v1056 = vadd.f32 0.0, %v1055
  %1057 = vmatmul.f32.gmra.mxu0 %v1030
  %v1058 = vpop.f32.mrf.mxu0
  %v1059 = vadd.f32 0.0, %v1058
  %1060 = vmatmul.f32.gmra.mxu0 %v1033
  %v1061 = vpop.f32.mrf.mxu0
  %v1062 = vadd.f32 0.0, %v1061
  %1063 = vmatmul.f32.gmra.mxu0 %v1036
  %v1064 = vpop.f32.mrf.mxu0
  %v1065 = vadd.f32 0.0, %v1064
  %1066 = vdwg.mxu0
  %v1067 = vld [vmem:[%s6 + $0x1f0] sm:$0xff]
  %v1068 = vld [vmem:[%s6 + $0x1f8] sm:$0xff]
  %v1069 = vld [vmem:[%s6 + $0x200] sm:$0xff]
  %v1070 = vld [vmem:[%s6 + $0x208] sm:$0xff]
  %v1071 = vperm.slane %v32, 6
  %v1073 = vsel %vm190, %v1056, 0
  %v1076 = vsel %vm190, %v1059, 0
  %v1079 = vsel %vm190, %v1062, 0
  %v1082 = vsel %vm190, %v1065, 0
  %1084 = vmatpush.msra.mxu0 0.0
  %1085 = vmatpush.msra.mxu0 0.0
  %1086 = vmatpush.msra.mxu0 0.0
  %1087 = vmatpush.msra.mxu0 0.0
  %1088 = vmatpush.msra.mxu0 0.0
  %1089 = vmatpush.msra.mxu0 0.0
  %1090 = vmatpush.msra.mxu0 0.0
  %1091 = vmatpush.msra.mxu0 0.0
  %1092 = vmatpush.msra.mxu0 0.0
  %1093 = vmatpush.msra.mxu0 0.0
  %1094 = vmatpush.msra.mxu0 0.0
  %1095 = vmatpush.msra.mxu0 0.0
  %1096 = vmatpush.msra.mxu0 %v1070
  %1097 = vmatpush.msra.mxu0 %v1069
  %1098 = vmatpush.msra.mxu0 %v1068
  %1099 = vmatpush.msra.mxu0 %v1067
  %1100 = vmatmul.f32.gmra.mxu0 %v1073
  %v1101 = vpop.f32.mrf.mxu0
  %v1102 = vadd.f32 %v1071, %v1101
  %1103 = vmatmul.f32.gmra.mxu0 %v1076
  %v1104 = vpop.f32.mrf.mxu0
  %v1105 = vadd.f32 %v1071, %v1104
  %1106 = vmatmul.f32.gmra.mxu0 %v1079
  %v1107 = vpop.f32.mrf.mxu0
  %v1108 = vadd.f32 %v1071, %v1107
  %1109 = vmatmul.f32.gmra.mxu0 %v1082
  %v1110 = vpop.f32.mrf.mxu0
  %v1111 = vadd.f32 %v1071, %v1110
  %1112 = vdwg.mxu0
  %v1113 = vtanh.pop %v1102
  %v1114 = vtanh.pop %v1105
  %v1115 = vtanh.pop %v1108
  %v1116 = vtanh.pop %v1111
  %1117 = vrot.lane.b32.xlu0 %v1056, 32
  %v1118 = vpop.permute.xlu0 %1117
  %1119 = vrot.lane.b32.xlu0 %v1059, 32
  %v1120 = vpop.permute.xlu0 %1119
  %1121 = vrot.lane.b32.xlu0 %v1062, 32
  %v1122 = vpop.permute.xlu0 %1121
  %1123 = vrot.lane.b32.xlu0 %v1065, 32
  %v1124 = vpop.permute.xlu0 %1123
  %v1129 = vsel %vm190, %v1113, %v1118
  %v1130 = vsel %vm190, %v1114, %v1120
  %v1131 = vsel %vm190, %v1115, %v1122
  %v1132 = vsel %vm190, %v1116, %v1124
  %v1133 = vld [vmem:[%s7 + $0x40] sm:$0xff]
  %v1134 = vld [vmem:[%s7 + $0x48] sm:$0xff]
  %v1135 = vld [vmem:[%s7 + $0x50] sm:$0xff]
  %v1136 = vld [vmem:[%s7 + $0x58] sm:$0xff]
  %v1137 = vld [vmem:[%s7 + $0x60] sm:$0xff]
  %v1138 = vld [vmem:[%s7 + $0x68] sm:$0xff]
  %v1139 = vld [vmem:[%s7 + $0x70] sm:$0xff]
  %v1140 = vld [vmem:[%s7 + $0x78] sm:$0xff]
  %v1142 = vsel %vm202, %v1129, 0
  %v1145 = vsel %vm202, %v1130, 0
  %v1148 = vsel %vm202, %v1131, 0
  %v1151 = vsel %vm202, %v1132, 0
  %1153 = vmatpush.msra.mxu0 0.0
  %1154 = vmatpush.msra.mxu0 0.0
  %1155 = vmatpush.msra.mxu0 0.0
  %1156 = vmatpush.msra.mxu0 0.0
  %1157 = vmatpush.msra.mxu0 0.0
  %1158 = vmatpush.msra.mxu0 0.0
  %1159 = vmatpush.msra.mxu0 0.0
  %1160 = vmatpush.msra.mxu0 0.0
  %1161 = vmatpush.msra.mxu0 %v1140
  %1162 = vmatpush.msra.mxu0 %v1139
  %1163 = vmatpush.msra.mxu0 %v1138
  %1164 = vmatpush.msra.mxu0 %v1137
  %1165 = vmatpush.msra.mxu0 %v1136
  %1166 = vmatpush.msra.mxu0 %v1135
  %1167 = vmatpush.msra.mxu0 %v1134
  %1168 = vmatpush.msra.mxu0 %v1133
  %1169 = vmatmul.f32.gmra.mxu0 %v1142
  %v1170 = vpop.f32.mrf.mxu0
  %v1171 = vadd.f32 0.0, %v1170
  %1172 = vmatmul.f32.gmra.mxu0 %v1145
  %v1173 = vpop.f32.mrf.mxu0
  %v1174 = vadd.f32 0.0, %v1173
  %1175 = vmatmul.f32.gmra.mxu0 %v1148
  %v1176 = vpop.f32.mrf.mxu0
  %v1177 = vadd.f32 0.0, %v1176
  %1178 = vmatmul.f32.gmra.mxu0 %v1151
  %v1179 = vpop.f32.mrf.mxu0
  %v1180 = vadd.f32 0.0, %v1179
  %1181 = vdwg.mxu0
  %1182 = vrot.lane.b32.xlu0 %v1056, 114
  %v1183 = vpop.permute.xlu0 %1182
  %1184 = vrot.lane.b32.xlu0 %v1059, 114
  %v1185 = vpop.permute.xlu0 %1184
  %1186 = vrot.lane.b32.xlu0 %v1062, 114
  %v1187 = vpop.permute.xlu0 %1186
  %1188 = vrot.lane.b32.xlu0 %v1065, 114
  %v1189 = vpop.permute.xlu0 %1188
  %v1194 = vmul.f32 %v1171, %v1183
  %v1195 = vmul.f32 %v1174, %v1185
  %v1196 = vmul.f32 %v1177, %v1187
  %v1197 = vmul.f32 %v1180, %v1189
  %1202 = vrot.lane.b32.xlu0 %v1194, 126
  %v1203 = vpop.permute.xlu0 %1202
  %1204 = vrot.lane.b32.xlu0 %v1195, 126
  %v1205 = vpop.permute.xlu0 %1204
  %1206 = vrot.lane.b32.xlu0 %v1196, 126
  %v1207 = vpop.permute.xlu0 %1206
  %1208 = vrot.lane.b32.xlu0 %v1197, 126
  %v1209 = vpop.permute.xlu0 %1208
  %vm1214 = vcmask 130048
  %v1215 = vsel %vm1214, %v1203, 0.0
  %1216 = vadd.xlane.f32.xlu0 %v1215
  %v1217 = vpop.xlane.xlu0 %1216
  %v1218 = vsel %vm1214, %v1205, 0.0
  %1219 = vadd.xlane.f32.xlu0 %v1218
  %v1220 = vpop.xlane.xlu0 %1219
  %v1221 = vsel %vm1214, %v1207, 0.0
  %1222 = vadd.xlane.f32.xlu0 %v1221
  %v1223 = vpop.xlane.xlu0 %1222
  %v1224 = vsel %vm1214, %v1209, 0.0
  %1225 = vadd.xlane.f32.xlu0 %v1224
  %v1226 = vpop.xlane.xlu0 %1225
  %v1227 = vlaneseq
  %v1228 = vshrl.u32 %v1227, 7
  %v1229 = vadd.s32 %v1228, 8
  %v1230 = vadd.s32 %v1228, 16
  %v1231 = vadd.s32 %v1228, 24
  %v1232 = vmul.u32 %v616, 8
  %vm1233 = vcmp.ge.s32.totalorder %v1228, %v1232
  %vm1234 = vcmp.ge.s32.totalorder %v1229, %v1232
  %vm1235 = vcmp.ge.s32.totalorder %v1230, %v1232
  %vm1236 = vcmp.ge.s32.totalorder %v1231, %v1232
  %v1237 = vadd.s32 %v616, 1
  %v1238 = vmul.u32 %v1237, 8
  %vm1239 = vcmp.lt.s32.totalorder %v1228, %v1238
  %vm1240 = vcmp.lt.s32.totalorder %v1229, %v1238
  %vm1241 = vcmp.lt.s32.totalorder %v1230, %v1238
  %vm1242 = vcmp.lt.s32.totalorder %v1231, %v1238
  %vm1243 = vmand %vm1233, %vm1239
  %vm1244 = vmand %vm1234, %vm1240
  %vm1245 = vmand %vm1235, %vm1241
  %vm1246 = vmand %vm1236, %vm1242
  %1248 = vset.pattern.permute.xlu0 0
  %1249 = vperm.xlu0 %1248, %v1171
  %v1250 = vpop.permute.xlu0 %1249
  %1253 = vset.pattern.permute.xlu0 0
  %1254 = vperm.xlu0 %1253, %v1174
  %v1255 = vpop.permute.xlu0 %1254
  %1258 = vset.pattern.permute.xlu0 0
  %1259 = vperm.xlu0 %1258, %v1177
  %v1260 = vpop.permute.xlu0 %1259
  %1263 = vset.pattern.permute.xlu0 0
  %1264 = vperm.xlu0 %1263, %v1180
  %v1265 = vpop.permute.xlu0 %1264
  %v1267 = vsel %vm1243, %v1250, -1e+30
  %v1268 = vsel %vm1244, %v1255, -1e+30
  %v1269 = vsel %vm1245, %v1260, -1e+30
  %v1270 = vsel %vm1246, %v1265, -1e+30
  %vm1271 = vcmask 31744
  %v1272 = vsel %vm1271, %v1267, -inf
  %v1273 = vsel %vm1271, %v1268, -inf
  %v1274 = vsel %vm1271, %v1269, -inf
  %v1275 = vsel %vm1271, %v1270, -inf
  %v1276 = vmax.f32 %v1272, %v1273
  %v1277 = vmax.f32 %v1274, %v1275
  %v1278 = vmax.f32 %v1276, %v1277
  %v1279 = vrot.slane %v1278, 4
  %v1280 = vmax.f32 %v1278, %v1279
  %v1281 = vrot.slane %v1280, 2
  %v1282 = vmax.f32 %v1280, %v1281
  %v1283 = vrot.slane %v1282, 1
  %v1284 = vmax.f32 %v1282, %v1283
  %v1285 = vsel %vm1243, %v1284, 0.0
  %v1286 = vsel %vm1244, %v1284, 0.0
  %v1287 = vsel %vm1245, %v1284, 0.0
  %v1288 = vsel %vm1246, %v1284, 0.0
  %v1289 = vsel %vm1271, %v1285, 0.0
  %1290 = vadd.xlane.f32.xlu0 %v1289
  %v1291 = vpop.xlane.xlu0 %1290
  %v1292 = vsel %vm1271, %v1286, 0.0
  %1293 = vadd.xlane.f32.xlu0 %v1292
  %v1294 = vpop.xlane.xlu0 %1293
  %v1295 = vsel %vm1271, %v1287, 0.0
  %1296 = vadd.xlane.f32.xlu0 %v1295
  %v1297 = vpop.xlane.xlu0 %1296
  %v1298 = vsel %vm1271, %v1288, 0.0
  %1299 = vadd.xlane.f32.xlu0 %v1298
  %v1300 = vpop.xlane.xlu0 %1299
  %v1301 = vsub.f32 %v1171, %v1291
  %v1302 = vsub.f32 %v1174, %v1294
  %v1303 = vsub.f32 %v1177, %v1297
  %v1304 = vsub.f32 %v1180, %v1300
  %v1305 = vmul.f32 %v1301, 1.442695
  %v1306 = vpow.pop %v1305
  %v1307 = vmul.f32 %v1302, 1.442695
  %v1308 = vpow.pop %v1307
  %v1309 = vmul.f32 %v1303, 1.442695
  %v1310 = vpow.pop %v1309
  %v1311 = vmul.f32 %v1304, 1.442695
  %v1312 = vpow.pop %v1311
  %1314 = vset.pattern.permute.xlu0 0
  %1315 = vperm.xlu0 %1314, %v1306
  %v1316 = vpop.permute.xlu0 %1315
  %1319 = vset.pattern.permute.xlu0 0
  %1320 = vperm.xlu0 %1319, %v1308
  %v1321 = vpop.permute.xlu0 %1320
  %1324 = vset.pattern.permute.xlu0 0
  %1325 = vperm.xlu0 %1324, %v1310
  %v1326 = vpop.permute.xlu0 %1325
  %1329 = vset.pattern.permute.xlu0 0
  %1330 = vperm.xlu0 %1329, %v1312
  %v1331 = vpop.permute.xlu0 %1330
  %v1333 = vsel %vm1243, %v1316, 0.0
  %v1334 = vsel %vm1244, %v1321, 0.0
  %v1335 = vsel %vm1245, %v1326, 0.0
  %v1336 = vsel %vm1246, %v1331, 0.0
  %v1337 = vsel %vm1271, %v1333, 0.0
  %v1338 = vsel %vm1271, %v1334, 0.0
  %v1339 = vadd.f32 %v1337, %v1338
  %v1340 = vsel %vm1271, %v1335, 0.0
  %v1341 = vadd.f32 %v1339, %v1340
  %v1342 = vsel %vm1271, %v1336, 0.0
  %v1343 = vadd.f32 %v1341, %v1342
  %v1344 = vrot.slane %v1343, 4
  %v1345 = vadd.f32 %v1343, %v1344
  %v1346 = vrot.slane %v1345, 2
  %v1347 = vadd.f32 %v1345, %v1346
  %v1348 = vrot.slane %v1347, 1
  %v1349 = vadd.f32 %v1347, %v1348
  %v1350 = vsel %vm1243, %v1349, 0.0
  %v1351 = vsel %vm1244, %v1349, 0.0
  %v1352 = vsel %vm1245, %v1349, 0.0
  %v1353 = vsel %vm1246, %v1349, 0.0
  %v1354 = vsel %vm1271, %v1350, 0.0
  %1355 = vadd.xlane.f32.xlu0 %v1354
  %v1356 = vpop.xlane.xlu0 %1355
  %v1357 = vsel %vm1271, %v1351, 0.0
  %1358 = vadd.xlane.f32.xlu0 %v1357
  %v1359 = vpop.xlane.xlu0 %1358
  %v1360 = vsel %vm1271, %v1352, 0.0
  %1361 = vadd.xlane.f32.xlu0 %v1360
  %v1362 = vpop.xlane.xlu0 %1361
  %v1363 = vsel %vm1271, %v1353, 0.0
  %1364 = vadd.xlane.f32.xlu0 %v1363
  %v1365 = vpop.xlane.xlu0 %1364
  %v1366 = vrcp.pop %v1356
  %v1367 = vrcp.pop %v1359
  %v1368 = vrcp.pop %v1362
  %v1369 = vrcp.pop %v1365
  %v1370 = vmul.f32 %v1306, %v1366
  %v1371 = vmul.f32 %v1308, %v1367
  %v1372 = vmul.f32 %v1310, %v1368
  %v1373 = vmul.f32 %v1312, %v1369
  %1374 = vrot.lane.b32.xlu0 %v1171, 127
  %v1375 = vpop.permute.xlu0 %1374
  %1376 = vrot.lane.b32.xlu0 %v1174, 127
  %v1377 = vpop.permute.xlu0 %1376
  %1378 = vrot.lane.b32.xlu0 %v1177, 127
  %v1379 = vpop.permute.xlu0 %1378
  %1380 = vrot.lane.b32.xlu0 %v1180, 127
  %v1381 = vpop.permute.xlu0 %1380
  %v1386 = vmul.f32 %v1370, %v1375
  %v1387 = vmul.f32 %v1371, %v1377
  %v1388 = vmul.f32 %v1372, %v1379
  %v1389 = vmul.f32 %v1373, %v1381
  %1391 = vset.pattern.permute.xlu0 0
  %1392 = vperm.xlu0 %1391, %v1386
  %v1393 = vpop.permute.xlu0 %1392
  %1396 = vset.pattern.permute.xlu0 0
  %1397 = vperm.xlu0 %1396, %v1387
  %v1398 = vpop.permute.xlu0 %1397
  %1401 = vset.pattern.permute.xlu0 0
  %1402 = vperm.xlu0 %1401, %v1388
  %v1403 = vpop.permute.xlu0 %1402
  %1406 = vset.pattern.permute.xlu0 0
  %1407 = vperm.xlu0 %1406, %v1389
  %v1408 = vpop.permute.xlu0 %1407
  %v1410 = vsel %vm1243, %v1393, 0.0
  %v1411 = vsel %vm1244, %v1398, 0.0
  %v1412 = vsel %vm1245, %v1403, 0.0
  %v1413 = vsel %vm1246, %v1408, 0.0
  %v1414 = vsel %vm1271, %v1410, 0.0
  %v1415 = vsel %vm1271, %v1411, 0.0
  %v1416 = vadd.f32 %v1414, %v1415
  %v1417 = vsel %vm1271, %v1412, 0.0
  %v1418 = vadd.f32 %v1416, %v1417
  %v1419 = vsel %vm1271, %v1413, 0.0
  %v1420 = vadd.f32 %v1418, %v1419
  %v1421 = vrot.slane %v1420, 4
  %v1422 = vadd.f32 %v1420, %v1421
  %v1423 = vrot.slane %v1422, 2
  %v1424 = vadd.f32 %v1422, %v1423
  %v1425 = vrot.slane %v1424, 1
  %v1426 = vadd.f32 %v1424, %v1425
  %v1427 = vmul.f32 %v1370, %v1217
  %v1428 = vmul.f32 %v1371, %v1220
  %v1429 = vmul.f32 %v1372, %v1223
  %v1430 = vmul.f32 %v1373, %v1226
  %1432 = vset.pattern.permute.xlu0 0
  %1433 = vperm.xlu0 %1432, %v1427
  %v1434 = vpop.permute.xlu0 %1433
  %1437 = vset.pattern.permute.xlu0 0
  %1438 = vperm.xlu0 %1437, %v1428
  %v1439 = vpop.permute.xlu0 %1438
  %1442 = vset.pattern.permute.xlu0 0
  %1443 = vperm.xlu0 %1442, %v1429
  %v1444 = vpop.permute.xlu0 %1443
  %1447 = vset.pattern.permute.xlu0 0
  %1448 = vperm.xlu0 %1447, %v1430
  %v1449 = vpop.permute.xlu0 %1448
  %v1451 = vsel %vm1243, %v1434, -1e+30
  %v1452 = vsel %vm1244, %v1439, -1e+30
  %v1453 = vsel %vm1245, %v1444, -1e+30
  %v1454 = vsel %vm1246, %v1449, -1e+30
  %v1455 = vsel %vm1271, %v1451, -inf
  %v1456 = vsel %vm1271, %v1452, -inf
  %v1457 = vsel %vm1271, %v1453, -inf
  %v1458 = vsel %vm1271, %v1454, -inf
  %v1459 = vmax.f32 %v1455, %v1456
  %v1460 = vmax.f32 %v1457, %v1458
  %v1461 = vmax.f32 %v1459, %v1460
  %v1462 = vrot.slane %v1461, 4
  %v1463 = vmax.f32 %v1461, %v1462
  %v1464 = vrot.slane %v1463, 2
  %v1465 = vmax.f32 %v1463, %v1464
  %v1466 = vrot.slane %v1465, 1
  %v1467 = vmax.f32 %v1465, %v1466
  %vm1468 = vcmp.eq.f32.partialorder %v1451, %v1467
  %vm1469 = vcmp.eq.f32.partialorder %v1452, %v1467
  %vm1470 = vcmp.eq.f32.partialorder %v1453, %v1467
  %vm1471 = vcmp.eq.f32.partialorder %v1454, %v1467
  %v1472 = vsel %vm1468, %v1228, 32
  %v1473 = vsel %vm1469, %v1229, 32
  %v1474 = vsel %vm1470, %v1230, 32
  %v1475 = vsel %vm1471, %v1231, 32
  %v1476 = vsel %vm1271, %v1472, 2147483647
  %v1477 = vsel %vm1271, %v1473, 2147483647
  %v1478 = vsel %vm1271, %v1474, 2147483647
  %v1479 = vsel %vm1271, %v1475, 2147483647
  %vm1480 = vcmp.lt.s32.totalorder %v1476, %v1477
  %v1481 = vsel %vm1480, %v1476, %v1477
  %vm1482 = vcmp.lt.s32.totalorder %v1478, %v1479
  %v1483 = vsel %vm1482, %v1478, %v1479
  %vm1484 = vcmp.lt.s32.totalorder %v1481, %v1483
  %v1485 = vsel %vm1484, %v1481, %v1483
  %v1486 = vrot.slane %v1485, 4
  %vm1487 = vcmp.lt.s32.totalorder %v1485, %v1486
  %v1488 = vsel %vm1487, %v1485, %v1486
  %v1489 = vrot.slane %v1488, 2
  %vm1490 = vcmp.lt.s32.totalorder %v1488, %v1489
  %v1491 = vsel %vm1490, %v1488, %v1489
  %v1492 = vrot.slane %v1491, 1
  %vm1493 = vcmp.lt.s32.totalorder %v1491, %v1492
  %v1494 = vsel %vm1493, %v1491, %v1492
  %v1495 = vadd.f32 %v1467, 0.0
  %vm1496 = vcmp.eq.s32.totalorder %v1228, %v1494
  %vm1497 = vcmp.eq.s32.totalorder %v1229, %v1494
  %vm1498 = vcmp.eq.s32.totalorder %v1230, %v1494
  %vm1499 = vcmp.eq.s32.totalorder %v1231, %v1494
  %v1500 = vsel %vm1496, -1e+30, %v1451
  %v1501 = vsel %vm1497, -1e+30, %v1452
  %v1502 = vsel %vm1498, -1e+30, %v1453
  %v1503 = vsel %vm1499, -1e+30, %v1454
  %v1504 = vsel %vm1271, %v1500, -inf
  %v1505 = vsel %vm1271, %v1501, -inf
  %v1506 = vsel %vm1271, %v1502, -inf
  %v1507 = vsel %vm1271, %v1503, -inf
  %v1508 = vmax.f32 %v1504, %v1505
  %v1509 = vmax.f32 %v1506, %v1507
  %v1510 = vmax.f32 %v1508, %v1509
  %v1511 = vrot.slane %v1510, 4
  %v1512 = vmax.f32 %v1510, %v1511
  %v1513 = vrot.slane %v1512, 2
  %v1514 = vmax.f32 %v1512, %v1513
  %v1515 = vrot.slane %v1514, 1
  %v1516 = vmax.f32 %v1514, %v1515
  %vm1517 = vcmp.eq.f32.partialorder %v1500, %v1516
  %vm1518 = vcmp.eq.f32.partialorder %v1501, %v1516
  %vm1519 = vcmp.eq.f32.partialorder %v1502, %v1516
  %vm1520 = vcmp.eq.f32.partialorder %v1503, %v1516
  %v1521 = vsel %vm1517, %v1228, 32
  %v1522 = vsel %vm1518, %v1229, 32
  %v1523 = vsel %vm1519, %v1230, 32
  %v1524 = vsel %vm1520, %v1231, 32
  %v1525 = vsel %vm1271, %v1521, 2147483647
  %v1526 = vsel %vm1271, %v1522, 2147483647
  %v1527 = vsel %vm1271, %v1523, 2147483647
  %v1528 = vsel %vm1271, %v1524, 2147483647
  %vm1529 = vcmp.lt.s32.totalorder %v1525, %v1526
  %v1530 = vsel %vm1529, %v1525, %v1526
  %vm1531 = vcmp.lt.s32.totalorder %v1527, %v1528
  %v1532 = vsel %vm1531, %v1527, %v1528
  %vm1533 = vcmp.lt.s32.totalorder %v1530, %v1532
  %v1534 = vsel %vm1533, %v1530, %v1532
  %v1535 = vrot.slane %v1534, 4
  %vm1536 = vcmp.lt.s32.totalorder %v1534, %v1535
  %v1537 = vsel %vm1536, %v1534, %v1535
  %v1538 = vrot.slane %v1537, 2
  %vm1539 = vcmp.lt.s32.totalorder %v1537, %v1538
  %v1540 = vsel %vm1539, %v1537, %v1538
  %v1541 = vrot.slane %v1540, 1
  %vm1542 = vcmp.lt.s32.totalorder %v1540, %v1541
  %v1543 = vsel %vm1542, %v1540, %v1541
  %v1544 = vadd.f32 %v1495, %v1516
  %vm1545 = vcmp.eq.s32.totalorder %v1228, %v1543
  %vm1546 = vcmp.eq.s32.totalorder %v1229, %v1543
  %vm1547 = vcmp.eq.s32.totalorder %v1230, %v1543
  %vm1548 = vcmp.eq.s32.totalorder %v1231, %v1543
  %v1549 = vsel %vm1545, -1e+30, %v1500
  %v1550 = vsel %vm1546, -1e+30, %v1501
  %v1551 = vsel %vm1547, -1e+30, %v1502
  %v1552 = vsel %vm1548, -1e+30, %v1503
  %v1553 = vsel %vm1271, %v1549, -inf
  %v1554 = vsel %vm1271, %v1550, -inf
  %v1555 = vsel %vm1271, %v1551, -inf
  %v1556 = vsel %vm1271, %v1552, -inf
  %v1557 = vmax.f32 %v1553, %v1554
  %v1558 = vmax.f32 %v1555, %v1556
  %v1559 = vmax.f32 %v1557, %v1558
  %v1560 = vrot.slane %v1559, 4
  %v1561 = vmax.f32 %v1559, %v1560
  %v1562 = vrot.slane %v1561, 2
  %v1563 = vmax.f32 %v1561, %v1562
  %v1564 = vrot.slane %v1563, 1
  %v1565 = vmax.f32 %v1563, %v1564
  %v1566 = vadd.f32 %v1544, %v1565
  %v1567 = vmul.f32 %v1566, 0.33333334
  %v1568 = vadd.f32 %v1567, %v1426
  %v1569 = vmul.f32 %v1568, 0.5
  %vm1570 = vcmp.eq.s32.totalorder %v1228, %v616
  %vm1571 = vcmp.eq.s32.totalorder %v1229, %v616
  %vm1572 = vcmp.eq.s32.totalorder %v1230, %v616
  %vm1573 = vcmp.eq.s32.totalorder %v1231, %v616
  %1575 = vset.pattern.permute.xlu0 0
  %1576 = vperm.xlu0 %1575, %v1370
  %v1577 = vpop.permute.xlu0 %1576
  %1580 = vset.pattern.permute.xlu0 0
  %1581 = vperm.xlu0 %1580, %v1371
  %v1582 = vpop.permute.xlu0 %1581
  %1585 = vset.pattern.permute.xlu0 0
  %1586 = vperm.xlu0 %1585, %v1372
  %v1587 = vpop.permute.xlu0 %1586
  %1590 = vset.pattern.permute.xlu0 0
  %1591 = vperm.xlu0 %1590, %v1373
  %v1592 = vpop.permute.xlu0 %1591
  %v1594 = vsel %vm1570, %v1577, 0.0
  %v1595 = vsel %vm1571, %v1582, 0.0
  %v1596 = vsel %vm1572, %v1587, 0.0
  %v1597 = vsel %vm1573, %v1592, 0.0
  %v1598 = vsel %vm190, %v1594, 0.0
  %v1599 = vsel %vm190, %v1595, 0.0
  %v1600 = vadd.f32 %v1598, %v1599
  %v1601 = vsel %vm190, %v1596, 0.0
  %v1602 = vadd.f32 %v1600, %v1601
  %v1603 = vsel %vm190, %v1597, 0.0
  %v1604 = vadd.f32 %v1602, %v1603
  %v1605 = vrot.slane %v1604, 4
  %v1606 = vadd.f32 %v1604, %v1605
  %v1607 = vrot.slane %v1606, 2
  %v1608 = vadd.f32 %v1606, %v1607
  %v1609 = vrot.slane %v1608, 1
  %v1610 = vadd.f32 %v1608, %v1609
  %1612 = vrot.lane.b32.xlu0 %v1610, 4
  %v1613 = vpop.permute.xlu0 %1612
  %v1615 = vsel %vm1271, %v1569, %v1613
  %vm1616 = vcmask 286720
  %1617 = vst.msk [vmem:[%s9] sm:$0x1] %vm1616, %v1615
  // Predicated region
  $region38: #{model_forward.1} parent=0 // pred_check
    _
  $region39: #{model_forward.1} parent=0 // pred_check_branch
    %1619 = sbr.rel (0) target = $region41
  $region40: #{model_forward.1} parent=0 // pred_region
    _
  $region41: #{model_forward.1} parent=0 // pred_fallthru
    _
  // Predicated region
  $region42: #{model_forward.1} parent=0 // pred_check
    _
  $region43: #{model_forward.1} parent=0 // pred_check_branch
    %1621 = sbr.rel (0) target = $region45
  $region44: #{model_forward.1} parent=0 // pred_region
    _
  $region45: #{model_forward.1} parent=0 // pred_fallthru
    _

</llo_original>
